<compile_context>
chip_gen: v7x
topology: tpu7x:2x2x1
jax: 0.10.0
libtpu: 0.0.40
codegen_flags: <defaults>
</compile_context>

<pallas_src>
import functools

import jax
import jax.numpy as jnp
from jax import lax
from jax.experimental import pallas as pl
from jax.experimental.pallas import tpu as pltpu

EPS = 1e-5


def _layernorm(x, g, b):
    mu = jnp.mean(x, axis=-1, keepdims=True)
    var = jnp.mean((x - mu) ** 2, axis=-1, keepdims=True)
    return (x - mu) * lax.rsqrt(var + EPS) * g + b


def encoder_kernel(x_ref, xr_ref, vec_ref, w_ref, o_ref, *,
                   n_tokens, batch_block, num_heads, reduction_ratio, w_offsets):
    N = n_tokens
    Bt = batch_block
    R2 = reduction_ratio * reduction_ratio
    Nr = N // R2
    M = Bt * N
    MR = Bt * Nr
    C = x_ref.shape[-1]
    hd = C // num_heads
    hidden = C // 2
    o_wl, o_wsr, o_wl2, o_wf1, o_wf2 = w_offsets

    # ---- packed parameter slabs (constant block index -> resident across steps) ----
    g1, b1 = vec_ref[0:1, :], vec_ref[1:2, :]
    bsr, gsr, bsrn = vec_ref[2:3, :], vec_ref[3:4, :], vec_ref[4:5, :]
    bl2 = vec_ref[5:6, :]
    g2, b2 = vec_ref[6:7, :], vec_ref[7:8, :]
    bf2 = vec_ref[8:9, :]
    bl = vec_ref[9:10, 0:hd]
    bf1 = vec_ref[10:11, 0:hidden]

    wl = w_ref[o_wl:o_wl + C, 0:hd]             # SRAttention.L       [C, hd]
    wl2c = w_ref[o_wl2:o_wl2 + hd, 0:C]         # collapsed L2        [hd, C]
    wf1 = w_ref[o_wf1:o_wf1 + C, 0:hidden]      # Feed_Forward.l1     [C, C//2]
    wf2 = w_ref[o_wf2:o_wf2 + hidden, 0:C]      # Feed_Forward.l2     [C//2, C]

    x = x_ref[...]                              # [M, C]  (Bt batch elements)
    n1 = _layernorm(x, g1, b1)                  # norm1

    # ---- SR(n1): row-major regroup [N, C] -> [Nr, R2*C], Linear(R2*C -> C), LN ----
    # xr_ref row r = (batch b, reduced token m), lanes grouped as [j, c].  LayerNorm
    # is row-wise, so it commutes with the regrouping: normalize each C-wide lane
    # group of the raw-x view and accumulate the K-blocked SR matmul (algebraically
    # identical to the single reshape + [MR, R2*C] x [R2*C, C] matmul).
    sr_lin = jnp.zeros((MR, C), dtype=jnp.float32)
    for j in range(R2):
        xj = xr_ref[:, j * C:(j + 1) * C]                            # x[b, m*R2+j, :]
        wsr_j = w_ref[o_wsr + j * C:o_wsr + (j + 1) * C, 0:C]
        sr_lin = sr_lin + jnp.dot(_layernorm(xj, g1, b1), wsr_j,
                                  preferred_element_type=jnp.float32)
    sr = _layernorm(sr_lin + bsr, gsr, bsrn)                          # [MR, C]

    # ---- SR attention: shared L => q from n1, k == v from sr (computed once) ----
    scale = hd ** -0.5
    q = (jnp.dot(n1, wl, preferred_element_type=jnp.float32) + bl) * scale   # [M, hd]
    kv = jnp.dot(sr, wl, preferred_element_type=jnp.float32) + bl            # [MR, hd]

    ai_parts = []
    for b in range(Bt):                          # static unroll; Bt kept small
        qb = q[b * N:(b + 1) * N, :]             # [N, hd]
        kb = kv[b * Nr:(b + 1) * Nr, :]          # [Nr, hd]
        s = lax.dot_general(qb, kb, (((1,), (1,)), ((), ())),
                            preferred_element_type=jnp.float32)       # [N, Nr]
        # torch.softmax(..., dim=1): softmax over the *query* axis (axis 0 here).
        s_max = jnp.max(s, axis=0, keepdims=True)
        p = jnp.exp(s - s_max)
        p = p / jnp.sum(p, axis=0, keepdims=True)
        ai_parts.append(jnp.dot(p, kb, preferred_element_type=jnp.float32))  # [N, hd]
    ai = ai_parts[0] if Bt == 1 else jnp.concatenate(ai_parts, axis=0)       # [M, hd]

    # identical heads: concat([ai]*H) @ wl2  ==  ai @ (sum of per-head row blocks)
    a = jnp.dot(ai, wl2c, preferred_element_type=jnp.float32) + bl2          # [M, C]

    # ---- residual + norm2 + feed-forward + residual ----
    x1 = x + a
    n2 = _layernorm(x1, g2, b2)
    h = jnp.maximum(jnp.dot(n2, wf1, preferred_element_type=jnp.float32) + bf1, 0.0)
    ff = jnp.dot(h, wf2, preferred_element_type=jnp.float32) + bf2
    o_ref[...] = (x1 + ff).astype(o_ref.dtype)


def _round_up(v, m):
    return (v + m - 1) // m * m


def _pack_params(params, *, C, num_heads, R2):
    """Pack the 16 small parameters into two slabs (fewer operands / DMA setups).

    vec_slab : [11, C]  rows = g1,b1,bsr,gsr,bsrn,bl2,g2,b2,bf2,bl(pad),bf1(pad)
    w_slab   : rows = wl | wsr | wl2_collapsed | wf1 | wf2, each section zero-padded
               to a multiple of 8 rows and to C columns.
    """
    hd = C // num_heads
    f32 = jnp.float32

    def row(v):
        v = jnp.asarray(v, f32).reshape(1, -1)
        return jnp.pad(v, ((0, 0), (0, C - v.shape[1])))

    vec_slab = jnp.concatenate(
        [row(params[k]) for k in
         ("g1", "b1", "bsr", "gsr", "bsrn", "bl2", "g2", "b2", "bf2", "bl", "bf1")],
        axis=0)

    # identical heads -> collapse L2: concat([ai]*H) @ wl2 == ai @ sum_h wl2_h
    wl2 = jnp.asarray(params["wl2"], f32)
    wl2c = wl2.reshape(num_heads, hd, C).sum(axis=0)          # [hd, C]

    def section(mat):
        mat = jnp.asarray(mat, f32)
        return jnp.pad(mat, ((0, _round_up(mat.shape[0], 8) - mat.shape[0]),
                             (0, C - mat.shape[1])))

    sections = [section(m) for m in
                (params["wl"], params["wsr"], wl2c, params["wf1"], params["wf2"])]
    offsets, off = [], 0
    for s in sections:
        offsets.append(off)
        off += s.shape[0]
    w_slab = jnp.concatenate(sections, axis=0)
    return vec_slab, w_slab, tuple(offsets)


def _choose_batch_block(B, N, Nr):
    # Prefer >= 2 grid steps (so the 'parallel' batch axis can use both v7x
    # TensorCores) with several batch elements per step (amortizes per-step
    # overhead), subject to the (8, 128) block-divisibility rule.
    def ok(bt):
        return (B % bt == 0
                and ((bt * N) % 8 == 0 or bt == B)
                and ((bt * Nr) % 8 == 0 or bt == B))
    for bt in range(min(max(B // 2, 1), 8), 0, -1):
        if ok(bt):
            return bt
    return B


def transformer_encoder(x, params, *, num_heads, reduction_ratio, batch_block=None):
    B, N, C = x.shape
    R2 = reduction_ratio * reduction_ratio
    assert N % R2 == 0 and C % num_heads == 0 and C % 2 == 0
    Nr = N // R2

    Bt = batch_block if batch_block is not None else _choose_batch_block(B, N, Nr)
    assert B % Bt == 0
    if Bt != B:
        assert (Bt * N) % 8 == 0 and (Bt * Nr) % 8 == 0, "batch_block breaks (8,128) tiling"

    vec_slab, w_slab, w_offsets = _pack_params(params, C=C, num_heads=num_heads, R2=R2)

    x2 = x.reshape(B * N, C)            # token-major view (LN / attention / FFN)
    xr = x.reshape(B * Nr, R2 * C)      # free wrapper-side SR regrouping view

    kernel = functools.partial(
        encoder_kernel, n_tokens=N, batch_block=Bt, num_heads=num_heads,
        reduction_ratio=reduction_ratio, w_offsets=w_offsets)

    out = pl.pallas_call(
        kernel,
        out_shape=jax.ShapeDtypeStruct((B * N, C), x.dtype),
        grid=(B // Bt,),
        in_specs=[
            pl.BlockSpec((Bt * N, C), lambda i: (i, 0)),
            pl.BlockSpec((Bt * Nr, R2 * C), lambda i: (i, 0)),
            pl.BlockSpec(vec_slab.shape, lambda i: (0, 0)),
            pl.BlockSpec(w_slab.shape, lambda i: (0, 0)),
        ],
        out_specs=pl.BlockSpec((Bt * N, C), lambda i: (i, 0)),
        compiler_params=pltpu.CompilerParams(dimension_semantics=("parallel",)),
    )(x2, xr, vec_slab, w_slab)
    return out.reshape(B, N, C)


def reference(x, p, *, num_heads, reduction_ratio):
    """Pure-JAX reference mirroring the PyTorch Transformer_Encoder forward exactly."""
    def ln(v, g, b):
        mu = v.mean(-1, keepdims=True)
        var = ((v - mu) ** 2).mean(-1, keepdims=True)
        return (v - mu) / jnp.sqrt(var + EPS) * g + b

    B, N, C = x.shape
    R2 = reduction_ratio * reduction_ratio
    Nr = N // R2
    hd = C // num_heads

    n1 = ln(x, p["g1"], p["b1"])
    reduced = n1.reshape(B, Nr, R2 * C)
    sr = ln(reduced @ p["wsr"] + p["bsr"], p["gsr"], p["bsrn"])
    q = n1 @ p["wl"] + p["bl"]
    k = sr @ p["wl"] + p["bl"]
    v = sr @ p["wl"] + p["bl"]
    s = q @ jnp.swapaxes(k, 1, 2) / (hd ** 0.5)
    prob = jax.nn.softmax(s, axis=1)            # dim=1, as in the PyTorch module
    ai = prob @ v
    sra = jnp.concatenate([ai] * num_heads, axis=2)
    a = sra @ p["wl2"] + p["bl2"]
    x1 = x + a
    n2 = ln(x1, p["g2"], p["b2"])
    ff = jnp.maximum(n2 @ p["wf1"] + p["bf1"], 0.0) @ p["wf2"] + p["bf2"]
    return x1 + ff


def make_params(key, C, num_heads, reduction_ratio):
    hd = C // num_heads
    R2 = reduction_ratio * reduction_ratio
    hidden = C // 2
    keys = jax.random.split(key, 16)

    def nrm(k, shape, scale=0.1):
        return (scale * jax.random.normal(k, shape)).astype(jnp.float32)

    return {
        "g1":   1.0 + nrm(keys[0], (1, C)),
        "b1":   nrm(keys[1], (1, C)),
        "wl":   nrm(keys[2], (C, hd)),
        "bl":   nrm(keys[3], (1, hd)),
        "wsr":  nrm(keys[4], (R2 * C, C)),
        "bsr":  nrm(keys[5], (1, C)),
        "gsr":  1.0 + nrm(keys[6], (1, C)),
        "bsrn": nrm(keys[7], (1, C)),
        "wl2":  nrm(keys[8], (C, C)),
        "bl2":  nrm(keys[9], (1, C)),
        "g2":   1.0 + nrm(keys[10], (1, C)),
        "b2":   nrm(keys[11], (1, C)),
        "wf1":  nrm(keys[12], (C, hidden)),
        "bf1":  nrm(keys[13], (1, hidden)),
        "wf2":  nrm(keys[14], (hidden, C)),
        "bf2":  nrm(keys[15], (1, C)),
    }


if __name__ == "__main__":
    # Transformer_Encoder(height=16, width=16, channels=8, reduction_ratio=2,
    #                     patch_dim=4, batch_size=4, num_heads=2)
    # -> token grid (16//4) x (16//4) = 16 tokens, C = 8, head_dim = 4,
    #    SR reduces 16 tokens -> 4 tokens (R^2 = 4).
    B, N, C = 4, 16, 8
    num_heads = 2
    reduction_ratio = 2

    key = jax.random.PRNGKey(0)
    k_x, k_p = jax.random.split(key)
    x = jax.random.normal(k_x, (B, N, C), dtype=jnp.float32)
    params = make_params(k_p, C, num_heads, reduction_ratio)

    out = transformer_encoder(x, params, num_heads=num_heads,
                              reduction_ratio=reduction_ratio)
    out = jax.block_until_ready(out)

    ref = jax.block_until_ready(
        reference(x, params, num_heads=num_heads, reduction_ratio=reduction_ratio))

    assert out.shape == (B, N, C)
    err = float(jnp.max(jnp.abs(out - ref)))
    assert jnp.allclose(out, ref, atol=1e-4, rtol=1e-4), f"max abs err = {err}"
    print("KERNEL_OK")
</pallas_src>

<mosaic_0001>
module attributes {stable_mosaic.version = 11 : i64} {
  func.func @encoder_kernel(%arg0: i32, %arg1: memref<32x8xf32, #tpu.memory_space<vmem>>, %arg2: memref<8x32xf32, #tpu.memory_space<vmem>>, %arg3: memref<11x8xf32, #tpu.memory_space<vmem>>, %arg4: memref<64x8xf32, #tpu.memory_space<vmem>>, %arg5: memref<32x8xf32, #tpu.memory_space<vmem>>) attributes {dimension_semantics = [#tpu.dimension_semantics<parallel>], iteration_bounds = array<i64: 2>, scalar_prefetch = 0 : i64, scratch_operands = 0 : i64, tpu.core_type = #tpu.core_type<tc>, window_params = [{transform_indices = @transform_0, window_bounds = array<i64: 32, 8>}, {transform_indices = @transform_1, window_bounds = array<i64: 8, 32>}, {pipeline_mode = #tpu.pipeline_mode<synchronous>, transform_indices = @transform_2, window_bounds = array<i64: 11, 8>}, {pipeline_mode = #tpu.pipeline_mode<synchronous>, transform_indices = @transform_3, window_bounds = array<i64: 64, 8>}, {transform_indices = @transform_4, window_bounds = array<i64: 32, 8>}]} {
    %c0 = arith.constant 0 : index
    %c0_0 = arith.constant 0 : index
    %0 = vector.load %arg3[%c0, %c0_0] : memref<11x8xf32, #tpu.memory_space<vmem>>, vector<1x8xf32>
    %c1 = arith.constant 1 : index
    %c0_1 = arith.constant 0 : index
    %1 = vector.load %arg3[%c1, %c0_1] : memref<11x8xf32, #tpu.memory_space<vmem>>, vector<1x8xf32>
    %c2 = arith.constant 2 : index
    %c0_2 = arith.constant 0 : index
    %2 = vector.load %arg3[%c2, %c0_2] : memref<11x8xf32, #tpu.memory_space<vmem>>, vector<1x8xf32>
    %c3 = arith.constant 3 : index
    %c0_3 = arith.constant 0 : index
    %3 = vector.load %arg3[%c3, %c0_3] : memref<11x8xf32, #tpu.memory_space<vmem>>, vector<1x8xf32>
    %c4 = arith.constant 4 : index
    %c0_4 = arith.constant 0 : index
    %4 = vector.load %arg3[%c4, %c0_4] : memref<11x8xf32, #tpu.memory_space<vmem>>, vector<1x8xf32>
    %c5 = arith.constant 5 : index
    %c0_5 = arith.constant 0 : index
    %5 = vector.load %arg3[%c5, %c0_5] : memref<11x8xf32, #tpu.memory_space<vmem>>, vector<1x8xf32>
    %c6 = arith.constant 6 : index
    %c0_6 = arith.constant 0 : index
    %6 = vector.load %arg3[%c6, %c0_6] : memref<11x8xf32, #tpu.memory_space<vmem>>, vector<1x8xf32>
    %c7 = arith.constant 7 : index
    %c0_7 = arith.constant 0 : index
    %7 = vector.load %arg3[%c7, %c0_7] : memref<11x8xf32, #tpu.memory_space<vmem>>, vector<1x8xf32>
    %c8 = arith.constant 8 : index
    %c0_8 = arith.constant 0 : index
    %8 = vector.load %arg3[%c8, %c0_8] : memref<11x8xf32, #tpu.memory_space<vmem>>, vector<1x8xf32>
    %c9 = arith.constant 9 : index
    %c0_9 = arith.constant 0 : index
    %9 = vector.load %arg3[%c9, %c0_9] : memref<11x8xf32, #tpu.memory_space<vmem>>, vector<1x4xf32>
    %c10 = arith.constant 10 : index
    %c0_10 = arith.constant 0 : index
    %10 = vector.load %arg3[%c10, %c0_10] : memref<11x8xf32, #tpu.memory_space<vmem>>, vector<1x4xf32>
    %c0_11 = arith.constant 0 : index
    %c0_12 = arith.constant 0 : index
    %11 = vector.load %arg4[%c0_11, %c0_12] : memref<64x8xf32, #tpu.memory_space<vmem>>, vector<8x4xf32>
    %c40 = arith.constant 40 : index
    %c0_13 = arith.constant 0 : index
    %12 = vector.load %arg4[%c40, %c0_13] : memref<64x8xf32, #tpu.memory_space<vmem>>, vector<4x8xf32>
    %c48 = arith.constant 48 : index
    %c0_14 = arith.constant 0 : index
    %13 = vector.load %arg4[%c48, %c0_14] : memref<64x8xf32, #tpu.memory_space<vmem>>, vector<8x4xf32>
    %c56 = arith.constant 56 : index
    %c0_15 = arith.constant 0 : index
    %14 = vector.load %arg4[%c56, %c0_15] : memref<64x8xf32, #tpu.memory_space<vmem>>, vector<4x8xf32>
    %c0_16 = arith.constant 0 : index
    %c0_17 = arith.constant 0 : index
    %15 = vector.load %arg1[%c0_16, %c0_17] : memref<32x8xf32, #tpu.memory_space<vmem>>, vector<32x8xf32>
    %cst = arith.constant dense<0.000000e+00> : vector<32xf32>
    %16 = vector.multi_reduction <add>, %15, %cst [1] : vector<32x8xf32> to vector<32xf32>
    %17 = vector.shape_cast %16 : vector<32xf32> to vector<32x1xf32>
    %cst_18 = arith.constant 8.000000e+00 : f32
    %18 = vector.broadcast %cst_18 : f32 to vector<32x1xf32>
    %19 = arith.divf %17, %18 : vector<32x1xf32>
    %20 = vector.broadcast %19 : vector<32x1xf32> to vector<32x8xf32>
    %21 = arith.subf %15, %20 : vector<32x8xf32>
    %22 = arith.mulf %21, %21 : vector<32x8xf32>
    %cst_19 = arith.constant dense<0.000000e+00> : vector<32xf32>
    %23 = vector.multi_reduction <add>, %22, %cst_19 [1] : vector<32x8xf32> to vector<32xf32>
    %24 = vector.shape_cast %23 : vector<32xf32> to vector<32x1xf32>
    %cst_20 = arith.constant 8.000000e+00 : f32
    %25 = vector.broadcast %cst_20 : f32 to vector<32x1xf32>
    %26 = arith.divf %24, %25 : vector<32x1xf32>
    %27 = vector.broadcast %19 : vector<32x1xf32> to vector<32x8xf32>
    %28 = arith.subf %15, %27 : vector<32x8xf32>
    %cst_21 = arith.constant 9.99999974E-6 : f32
    %29 = vector.broadcast %cst_21 : f32 to vector<32x1xf32>
    %30 = arith.addf %26, %29 : vector<32x1xf32>
    %31 = math.rsqrt %30 : vector<32x1xf32>
    %32 = vector.broadcast %31 : vector<32x1xf32> to vector<32x8xf32>
    %33 = arith.mulf %28, %32 : vector<32x8xf32>
    %34 = vector.broadcast %0 : vector<1x8xf32> to vector<32x8xf32>
    %35 = arith.mulf %33, %34 : vector<32x8xf32>
    %36 = vector.broadcast %1 : vector<1x8xf32> to vector<32x8xf32>
    %37 = arith.addf %35, %36 : vector<32x8xf32>
    %cst_22 = arith.constant 0.000000e+00 : f32
    %38 = vector.broadcast %cst_22 : f32 to vector<8x8xf32>
    %c0_23 = arith.constant 0 : index
    %c0_24 = arith.constant 0 : index
    %39 = vector.load %arg2[%c0_23, %c0_24] : memref<8x32xf32, #tpu.memory_space<vmem>>, vector<8x8xf32>
    %c8_25 = arith.constant 8 : index
    %c0_26 = arith.constant 0 : index
    %40 = vector.load %arg4[%c8_25, %c0_26] : memref<64x8xf32, #tpu.memory_space<vmem>>, vector<8x8xf32>
    %cst_27 = arith.constant dense<0.000000e+00> : vector<8xf32>
    %41 = vector.multi_reduction <add>, %39, %cst_27 [1] : vector<8x8xf32> to vector<8xf32>
    %42 = vector.shape_cast %41 : vector<8xf32> to vector<8x1xf32>
    %cst_28 = arith.constant 8.000000e+00 : f32
    %43 = vector.broadcast %cst_28 : f32 to vector<8x1xf32>
    %44 = arith.divf %42, %43 : vector<8x1xf32>
    %45 = vector.broadcast %44 : vector<8x1xf32> to vector<8x8xf32>
    %46 = arith.subf %39, %45 : vector<8x8xf32>
    %47 = arith.mulf %46, %46 : vector<8x8xf32>
    %cst_29 = arith.constant dense<0.000000e+00> : vector<8xf32>
    %48 = vector.multi_reduction <add>, %47, %cst_29 [1] : vector<8x8xf32> to vector<8xf32>
    %49 = vector.shape_cast %48 : vector<8xf32> to vector<8x1xf32>
    %cst_30 = arith.constant 8.000000e+00 : f32
    %50 = vector.broadcast %cst_30 : f32 to vector<8x1xf32>
    %51 = arith.divf %49, %50 : vector<8x1xf32>
    %52 = vector.broadcast %44 : vector<8x1xf32> to vector<8x8xf32>
    %53 = arith.subf %39, %52 : vector<8x8xf32>
    %cst_31 = arith.constant 9.99999974E-6 : f32
    %54 = vector.broadcast %cst_31 : f32 to vector<8x1xf32>
    %55 = arith.addf %51, %54 : vector<8x1xf32>
    %56 = math.rsqrt %55 : vector<8x1xf32>
    %57 = vector.broadcast %56 : vector<8x1xf32> to vector<8x8xf32>
    %58 = arith.mulf %53, %57 : vector<8x8xf32>
    %59 = vector.broadcast %0 : vector<1x8xf32> to vector<8x8xf32>
    %60 = arith.mulf %58, %59 : vector<8x8xf32>
    %61 = vector.broadcast %1 : vector<1x8xf32> to vector<8x8xf32>
    %62 = arith.addf %60, %61 : vector<8x8xf32>
    %cst_32 = arith.constant dense<0.000000e+00> : vector<8x8xf32>
    %63 = tpu.matmul %62, %40, %cst_32 {dimension_numbers = #tpu.dot_dimension_numbers<[1], [0], [0], [1], [0, 0, 1, 1], [], []>} : vector<8x8xf32>, vector<8x8xf32>, vector<8x8xf32> -> vector<8x8xf32>
    %64 = arith.addf %38, %63 : vector<8x8xf32>
    %c0_33 = arith.constant 0 : index
    %c8_34 = arith.constant 8 : index
    %65 = vector.load %arg2[%c0_33, %c8_34] : memref<8x32xf32, #tpu.memory_space<vmem>>, vector<8x8xf32>
    %c16 = arith.constant 16 : index
    %c0_35 = arith.constant 0 : index
    %66 = vector.load %arg4[%c16, %c0_35] : memref<64x8xf32, #tpu.memory_space<vmem>>, vector<8x8xf32>
    %cst_36 = arith.constant dense<0.000000e+00> : vector<8xf32>
    %67 = vector.multi_reduction <add>, %65, %cst_36 [1] : vector<8x8xf32> to vector<8xf32>
    %68 = vector.shape_cast %67 : vector<8xf32> to vector<8x1xf32>
    %cst_37 = arith.constant 8.000000e+00 : f32
    %69 = vector.broadcast %cst_37 : f32 to vector<8x1xf32>
    %70 = arith.divf %68, %69 : vector<8x1xf32>
    %71 = vector.broadcast %70 : vector<8x1xf32> to vector<8x8xf32>
    %72 = arith.subf %65, %71 : vector<8x8xf32>
    %73 = arith.mulf %72, %72 : vector<8x8xf32>
    %cst_38 = arith.constant dense<0.000000e+00> : vector<8xf32>
    %74 = vector.multi_reduction <add>, %73, %cst_38 [1] : vector<8x8xf32> to vector<8xf32>
    %75 = vector.shape_cast %74 : vector<8xf32> to vector<8x1xf32>
    %cst_39 = arith.constant 8.000000e+00 : f32
    %76 = vector.broadcast %cst_39 : f32 to vector<8x1xf32>
    %77 = arith.divf %75, %76 : vector<8x1xf32>
    %78 = vector.broadcast %70 : vector<8x1xf32> to vector<8x8xf32>
    %79 = arith.subf %65, %78 : vector<8x8xf32>
    %cst_40 = arith.constant 9.99999974E-6 : f32
    %80 = vector.broadcast %cst_40 : f32 to vector<8x1xf32>
    %81 = arith.addf %77, %80 : vector<8x1xf32>
    %82 = math.rsqrt %81 : vector<8x1xf32>
    %83 = vector.broadcast %82 : vector<8x1xf32> to vector<8x8xf32>
    %84 = arith.mulf %79, %83 : vector<8x8xf32>
    %85 = vector.broadcast %0 : vector<1x8xf32> to vector<8x8xf32>
    %86 = arith.mulf %84, %85 : vector<8x8xf32>
    %87 = vector.broadcast %1 : vector<1x8xf32> to vector<8x8xf32>
    %88 = arith.addf %86, %87 : vector<8x8xf32>
    %cst_41 = arith.constant dense<0.000000e+00> : vector<8x8xf32>
    %89 = tpu.matmul %88, %66, %cst_41 {dimension_numbers = #tpu.dot_dimension_numbers<[1], [0], [0], [1], [0, 0, 1, 1], [], []>} : vector<8x8xf32>, vector<8x8xf32>, vector<8x8xf32> -> vector<8x8xf32>
    %90 = arith.addf %64, %89 : vector<8x8xf32>
    %c0_42 = arith.constant 0 : index
    %c16_43 = arith.constant 16 : index
    %91 = vector.load %arg2[%c0_42, %c16_43] : memref<8x32xf32, #tpu.memory_space<vmem>>, vector<8x8xf32>
    %c24 = arith.constant 24 : index
    %c0_44 = arith.constant 0 : index
    %92 = vector.load %arg4[%c24, %c0_44] : memref<64x8xf32, #tpu.memory_space<vmem>>, vector<8x8xf32>
    %cst_45 = arith.constant dense<0.000000e+00> : vector<8xf32>
    %93 = vector.multi_reduction <add>, %91, %cst_45 [1] : vector<8x8xf32> to vector<8xf32>
    %94 = vector.shape_cast %93 : vector<8xf32> to vector<8x1xf32>
    %cst_46 = arith.constant 8.000000e+00 : f32
    %95 = vector.broadcast %cst_46 : f32 to vector<8x1xf32>
    %96 = arith.divf %94, %95 : vector<8x1xf32>
    %97 = vector.broadcast %96 : vector<8x1xf32> to vector<8x8xf32>
    %98 = arith.subf %91, %97 : vector<8x8xf32>
    %99 = arith.mulf %98, %98 : vector<8x8xf32>
    %cst_47 = arith.constant dense<0.000000e+00> : vector<8xf32>
    %100 = vector.multi_reduction <add>, %99, %cst_47 [1] : vector<8x8xf32> to vector<8xf32>
    %101 = vector.shape_cast %100 : vector<8xf32> to vector<8x1xf32>
    %cst_48 = arith.constant 8.000000e+00 : f32
    %102 = vector.broadcast %cst_48 : f32 to vector<8x1xf32>
    %103 = arith.divf %101, %102 : vector<8x1xf32>
    %104 = vector.broadcast %96 : vector<8x1xf32> to vector<8x8xf32>
    %105 = arith.subf %91, %104 : vector<8x8xf32>
    %cst_49 = arith.constant 9.99999974E-6 : f32
    %106 = vector.broadcast %cst_49 : f32 to vector<8x1xf32>
    %107 = arith.addf %103, %106 : vector<8x1xf32>
    %108 = math.rsqrt %107 : vector<8x1xf32>
    %109 = vector.broadcast %108 : vector<8x1xf32> to vector<8x8xf32>
    %110 = arith.mulf %105, %109 : vector<8x8xf32>
    %111 = vector.broadcast %0 : vector<1x8xf32> to vector<8x8xf32>
    %112 = arith.mulf %110, %111 : vector<8x8xf32>
    %113 = vector.broadcast %1 : vector<1x8xf32> to vector<8x8xf32>
    %114 = arith.addf %112, %113 : vector<8x8xf32>
    %cst_50 = arith.constant dense<0.000000e+00> : vector<8x8xf32>
    %115 = tpu.matmul %114, %92, %cst_50 {dimension_numbers = #tpu.dot_dimension_numbers<[1], [0], [0], [1], [0, 0, 1, 1], [], []>} : vector<8x8xf32>, vector<8x8xf32>, vector<8x8xf32> -> vector<8x8xf32>
    %116 = arith.addf %90, %115 : vector<8x8xf32>
    %c0_51 = arith.constant 0 : index
    %c24_52 = arith.constant 24 : index
    %117 = vector.load %arg2[%c0_51, %c24_52] : memref<8x32xf32, #tpu.memory_space<vmem>>, vector<8x8xf32>
    %c32 = arith.constant 32 : index
    %c0_53 = arith.constant 0 : index
    %118 = vector.load %arg4[%c32, %c0_53] : memref<64x8xf32, #tpu.memory_space<vmem>>, vector<8x8xf32>
    %cst_54 = arith.constant dense<0.000000e+00> : vector<8xf32>
    %119 = vector.multi_reduction <add>, %117, %cst_54 [1] : vector<8x8xf32> to vector<8xf32>
    %120 = vector.shape_cast %119 : vector<8xf32> to vector<8x1xf32>
    %cst_55 = arith.constant 8.000000e+00 : f32
    %121 = vector.broadcast %cst_55 : f32 to vector<8x1xf32>
    %122 = arith.divf %120, %121 : vector<8x1xf32>
    %123 = vector.broadcast %122 : vector<8x1xf32> to vector<8x8xf32>
    %124 = arith.subf %117, %123 : vector<8x8xf32>
    %125 = arith.mulf %124, %124 : vector<8x8xf32>
    %cst_56 = arith.constant dense<0.000000e+00> : vector<8xf32>
    %126 = vector.multi_reduction <add>, %125, %cst_56 [1] : vector<8x8xf32> to vector<8xf32>
    %127 = vector.shape_cast %126 : vector<8xf32> to vector<8x1xf32>
    %cst_57 = arith.constant 8.000000e+00 : f32
    %128 = vector.broadcast %cst_57 : f32 to vector<8x1xf32>
    %129 = arith.divf %127, %128 : vector<8x1xf32>
    %130 = vector.broadcast %122 : vector<8x1xf32> to vector<8x8xf32>
    %131 = arith.subf %117, %130 : vector<8x8xf32>
    %cst_58 = arith.constant 9.99999974E-6 : f32
    %132 = vector.broadcast %cst_58 : f32 to vector<8x1xf32>
    %133 = arith.addf %129, %132 : vector<8x1xf32>
    %134 = math.rsqrt %133 : vector<8x1xf32>
    %135 = vector.broadcast %134 : vector<8x1xf32> to vector<8x8xf32>
    %136 = arith.mulf %131, %135 : vector<8x8xf32>
    %137 = vector.broadcast %0 : vector<1x8xf32> to vector<8x8xf32>
    %138 = arith.mulf %136, %137 : vector<8x8xf32>
    %139 = vector.broadcast %1 : vector<1x8xf32> to vector<8x8xf32>
    %140 = arith.addf %138, %139 : vector<8x8xf32>
    %cst_59 = arith.constant dense<0.000000e+00> : vector<8x8xf32>
    %141 = tpu.matmul %140, %118, %cst_59 {dimension_numbers = #tpu.dot_dimension_numbers<[1], [0], [0], [1], [0, 0, 1, 1], [], []>} : vector<8x8xf32>, vector<8x8xf32>, vector<8x8xf32> -> vector<8x8xf32>
    %142 = arith.addf %116, %141 : vector<8x8xf32>
    %143 = vector.broadcast %2 : vector<1x8xf32> to vector<8x8xf32>
    %144 = arith.addf %142, %143 : vector<8x8xf32>
    %cst_60 = arith.constant dense<0.000000e+00> : vector<8xf32>
    %145 = vector.multi_reduction <add>, %144, %cst_60 [1] : vector<8x8xf32> to vector<8xf32>
    %146 = vector.shape_cast %145 : vector<8xf32> to vector<8x1xf32>
    %cst_61 = arith.constant 8.000000e+00 : f32
    %147 = vector.broadcast %cst_61 : f32 to vector<8x1xf32>
    %148 = arith.divf %146, %147 : vector<8x1xf32>
    %149 = vector.broadcast %148 : vector<8x1xf32> to vector<8x8xf32>
    %150 = arith.subf %144, %149 : vector<8x8xf32>
    %151 = arith.mulf %150, %150 : vector<8x8xf32>
    %cst_62 = arith.constant dense<0.000000e+00> : vector<8xf32>
    %152 = vector.multi_reduction <add>, %151, %cst_62 [1] : vector<8x8xf32> to vector<8xf32>
    %153 = vector.shape_cast %152 : vector<8xf32> to vector<8x1xf32>
    %cst_63 = arith.constant 8.000000e+00 : f32
    %154 = vector.broadcast %cst_63 : f32 to vector<8x1xf32>
    %155 = arith.divf %153, %154 : vector<8x1xf32>
    %156 = vector.broadcast %148 : vector<8x1xf32> to vector<8x8xf32>
    %157 = arith.subf %144, %156 : vector<8x8xf32>
    %cst_64 = arith.constant 9.99999974E-6 : f32
    %158 = vector.broadcast %cst_64 : f32 to vector<8x1xf32>
    %159 = arith.addf %155, %158 : vector<8x1xf32>
    %160 = math.rsqrt %159 : vector<8x1xf32>
    %161 = vector.broadcast %160 : vector<8x1xf32> to vector<8x8xf32>
    %162 = arith.mulf %157, %161 : vector<8x8xf32>
    %163 = vector.broadcast %3 : vector<1x8xf32> to vector<8x8xf32>
    %164 = arith.mulf %162, %163 : vector<8x8xf32>
    %165 = vector.broadcast %4 : vector<1x8xf32> to vector<8x8xf32>
    %166 = arith.addf %164, %165 : vector<8x8xf32>
    %cst_65 = arith.constant dense<0.000000e+00> : vector<32x4xf32>
    %167 = tpu.matmul %37, %11, %cst_65 {dimension_numbers = #tpu.dot_dimension_numbers<[1], [0], [0], [1], [0, 0, 1, 1], [], []>} : vector<32x8xf32>, vector<8x4xf32>, vector<32x4xf32> -> vector<32x4xf32>
    %168 = vector.broadcast %9 : vector<1x4xf32> to vector<32x4xf32>
    %169 = arith.addf %167, %168 : vector<32x4xf32>
    %cst_66 = arith.constant 5.000000e-01 : f32
    %170 = vector.broadcast %cst_66 : f32 to vector<32x4xf32>
    %171 = arith.mulf %169, %170 : vector<32x4xf32>
    %cst_67 = arith.constant dense<0.000000e+00> : vector<8x4xf32>
    %172 = tpu.matmul %166, %11, %cst_67 {dimension_numbers = #tpu.dot_dimension_numbers<[1], [0], [0], [1], [0, 0, 1, 1], [], []>} : vector<8x8xf32>, vector<8x4xf32>, vector<8x4xf32> -> vector<8x4xf32>
    %173 = vector.broadcast %9 : vector<1x4xf32> to vector<8x4xf32>
    %174 = arith.addf %172, %173 : vector<8x4xf32>
    %175 = vector.extract_strided_slice %171 {offsets = [0, 0], sizes = [16, 4], strides = [1, 1]} : vector<32x4xf32> to vector<16x4xf32>
    %176 = vector.extract_strided_slice %174 {offsets = [0, 0], sizes = [4, 4], strides = [1, 1]} : vector<8x4xf32> to vector<4x4xf32>
    %cst_68 = arith.constant dense<0.000000e+00> : vector<16x4xf32>
    %177 = tpu.matmul %175, %176, %cst_68 {dimension_numbers = #tpu.dot_dimension_numbers<[1], [1], [0], [0], [0, 0, 1, 0], [], []>} : vector<16x4xf32>, vector<4x4xf32>, vector<16x4xf32> -> vector<16x4xf32>
    %cst_69 = arith.constant dense<0xFF800000> : vector<4xf32>
    %178 = vector.multi_reduction <maximumf>, %177, %cst_69 [0] : vector<16x4xf32> to vector<4xf32>
    %179 = vector.shape_cast %178 : vector<4xf32> to vector<1x4xf32>
    %180 = vector.broadcast %179 : vector<1x4xf32> to vector<16x4xf32>
    %181 = arith.subf %177, %180 : vector<16x4xf32>
    %182 = math.exp %181 : vector<16x4xf32>
    %cst_70 = arith.constant dense<0.000000e+00> : vector<4xf32>
    %183 = vector.multi_reduction <add>, %182, %cst_70 [0] : vector<16x4xf32> to vector<4xf32>
    %184 = vector.shape_cast %183 : vector<4xf32> to vector<1x4xf32>
    %185 = vector.broadcast %184 : vector<1x4xf32> to vector<16x4xf32>
    %186 = arith.divf %182, %185 : vector<16x4xf32>
    %cst_71 = arith.constant dense<0.000000e+00> : vector<16x4xf32>
    %187 = tpu.matmul %186, %176, %cst_71 {dimension_numbers = #tpu.dot_dimension_numbers<[1], [0], [0], [1], [0, 0, 1, 1], [], []>} : vector<16x4xf32>, vector<4x4xf32>, vector<16x4xf32> -> vector<16x4xf32>
    %188 = vector.extract_strided_slice %171 {offsets = [16, 0], sizes = [16, 4], strides = [1, 1]} : vector<32x4xf32> to vector<16x4xf32>
    %189 = vector.extract_strided_slice %174 {offsets = [4, 0], sizes = [4, 4], strides = [1, 1]} : vector<8x4xf32> to vector<4x4xf32>
    %cst_72 = arith.constant dense<0.000000e+00> : vector<16x4xf32>
    %190 = tpu.matmul %188, %189, %cst_72 {dimension_numbers = #tpu.dot_dimension_numbers<[1], [1], [0], [0], [0, 0, 1, 0], [], []>} : vector<16x4xf32>, vector<4x4xf32>, vector<16x4xf32> -> vector<16x4xf32>
    %cst_73 = arith.constant dense<0xFF800000> : vector<4xf32>
    %191 = vector.multi_reduction <maximumf>, %190, %cst_73 [0] : vector<16x4xf32> to vector<4xf32>
    %192 = vector.shape_cast %191 : vector<4xf32> to vector<1x4xf32>
    %193 = vector.broadcast %192 : vector<1x4xf32> to vector<16x4xf32>
    %194 = arith.subf %190, %193 : vector<16x4xf32>
    %195 = math.exp %194 : vector<16x4xf32>
    %cst_74 = arith.constant dense<0.000000e+00> : vector<4xf32>
    %196 = vector.multi_reduction <add>, %195, %cst_74 [0] : vector<16x4xf32> to vector<4xf32>
    %197 = vector.shape_cast %196 : vector<4xf32> to vector<1x4xf32>
    %198 = vector.broadcast %197 : vector<1x4xf32> to vector<16x4xf32>
    %199 = arith.divf %195, %198 : vector<16x4xf32>
    %cst_75 = arith.constant dense<0.000000e+00> : vector<16x4xf32>
    %200 = tpu.matmul %199, %189, %cst_75 {dimension_numbers = #tpu.dot_dimension_numbers<[1], [0], [0], [1], [0, 0, 1, 1], [], []>} : vector<16x4xf32>, vector<4x4xf32>, vector<16x4xf32> -> vector<16x4xf32>
    %201 = tpu.concatenate %187, %200 in 0 : vector<16x4xf32>, vector<16x4xf32> -> vector<32x4xf32>
    %cst_76 = arith.constant dense<0.000000e+00> : vector<32x8xf32>
    %202 = tpu.matmul %201, %12, %cst_76 {dimension_numbers = #tpu.dot_dimension_numbers<[1], [0], [0], [1], [0, 0, 1, 1], [], []>} : vector<32x4xf32>, vector<4x8xf32>, vector<32x8xf32> -> vector<32x8xf32>
    %203 = vector.broadcast %5 : vector<1x8xf32> to vector<32x8xf32>
    %204 = arith.addf %202, %203 : vector<32x8xf32>
    %205 = arith.addf %15, %204 : vector<32x8xf32>
    %cst_77 = arith.constant dense<0.000000e+00> : vector<32xf32>
    %206 = vector.multi_reduction <add>, %205, %cst_77 [1] : vector<32x8xf32> to vector<32xf32>
    %207 = vector.shape_cast %206 : vector<32xf32> to vector<32x1xf32>
    %cst_78 = arith.constant 8.000000e+00 : f32
    %208 = vector.broadcast %cst_78 : f32 to vector<32x1xf32>
    %209 = arith.divf %207, %208 : vector<32x1xf32>
    %210 = vector.broadcast %209 : vector<32x1xf32> to vector<32x8xf32>
    %211 = arith.subf %205, %210 : vector<32x8xf32>
    %212 = arith.mulf %211, %211 : vector<32x8xf32>
    %cst_79 = arith.constant dense<0.000000e+00> : vector<32xf32>
    %213 = vector.multi_reduction <add>, %212, %cst_79 [1] : vector<32x8xf32> to vector<32xf32>
    %214 = vector.shape_cast %213 : vector<32xf32> to vector<32x1xf32>
    %cst_80 = arith.constant 8.000000e+00 : f32
    %215 = vector.broadcast %cst_80 : f32 to vector<32x1xf32>
    %216 = arith.divf %214, %215 : vector<32x1xf32>
    %217 = vector.broadcast %209 : vector<32x1xf32> to vector<32x8xf32>
    %218 = arith.subf %205, %217 : vector<32x8xf32>
    %cst_81 = arith.constant 9.99999974E-6 : f32
    %219 = vector.broadcast %cst_81 : f32 to vector<32x1xf32>
    %220 = arith.addf %216, %219 : vector<32x1xf32>
    %221 = math.rsqrt %220 : vector<32x1xf32>
    %222 = vector.broadcast %221 : vector<32x1xf32> to vector<32x8xf32>
    %223 = arith.mulf %218, %222 : vector<32x8xf32>
    %224 = vector.broadcast %6 : vector<1x8xf32> to vector<32x8xf32>
    %225 = arith.mulf %223, %224 : vector<32x8xf32>
    %226 = vector.broadcast %7 : vector<1x8xf32> to vector<32x8xf32>
    %227 = arith.addf %225, %226 : vector<32x8xf32>
    %cst_82 = arith.constant dense<0.000000e+00> : vector<32x4xf32>
    %228 = tpu.matmul %227, %13, %cst_82 {dimension_numbers = #tpu.dot_dimension_numbers<[1], [0], [0], [1], [0, 0, 1, 1], [], []>} : vector<32x8xf32>, vector<8x4xf32>, vector<32x4xf32> -> vector<32x4xf32>
    %229 = vector.broadcast %10 : vector<1x4xf32> to vector<32x4xf32>
    %230 = arith.addf %228, %229 : vector<32x4xf32>
    %cst_83 = arith.constant 0.000000e+00 : f32
    %231 = vector.broadcast %cst_83 : f32 to vector<32x4xf32>
    %232 = arith.maximumf %230, %231 : vector<32x4xf32>
    %cst_84 = arith.constant dense<0.000000e+00> : vector<32x8xf32>
    %233 = tpu.matmul %232, %14, %cst_84 {dimension_numbers = #tpu.dot_dimension_numbers<[1], [0], [0], [1], [0, 0, 1, 1], [], []>} : vector<32x4xf32>, vector<4x8xf32>, vector<32x8xf32> -> vector<32x8xf32>
    %234 = vector.broadcast %8 : vector<1x8xf32> to vector<32x8xf32>
    %235 = arith.addf %233, %234 : vector<32x8xf32>
    %236 = arith.addf %205, %235 : vector<32x8xf32>
    %c0_85 = arith.constant 0 : index
    %c0_86 = arith.constant 0 : index
    %237 = vector.load %arg5[%c0_85, %c0_86] : memref<32x8xf32, #tpu.memory_space<vmem>>, vector<32x8xf32>
    tpu.vector_store %arg5[%c0_85, %c0_86], %236 {strides = array<i32>} : memref<32x8xf32, #tpu.memory_space<vmem>>, vector<32x8xf32>,
    return
  }
  func.func @transform_0(%arg0: i32) -> (i32, i32) {
    %c0_i32 = arith.constant 0 : i32
    %c0_i32_0 = arith.constant 0 : i32
    return %arg0, %c0_i32 : i32, i32
  }
  func.func @transform_1(%arg0: i32) -> (i32, i32) {
    %c0_i32 = arith.constant 0 : i32
    %c0_i32_0 = arith.constant 0 : i32
    return %arg0, %c0_i32 : i32, i32
  }
  func.func @transform_2(%arg0: i32) -> (i32, i32) {
    %c0_i32 = arith.constant 0 : i32
    %c0_i32_0 = arith.constant 0 : i32
    %c0_i32_1 = arith.constant 0 : i32
    return %c0_i32, %c0_i32_0 : i32, i32
  }
  func.func @transform_3(%arg0: i32) -> (i32, i32) {
    %c0_i32 = arith.constant 0 : i32
    %c0_i32_0 = arith.constant 0 : i32
    %c0_i32_1 = arith.constant 0 : i32
    return %c0_i32, %c0_i32_0 : i32, i32
  }
  func.func @transform_4(%arg0: i32) -> (i32, i32) {
    %c0_i32 = arith.constant 0 : i32
    %c0_i32_0 = arith.constant 0 : i32
    return %arg0, %c0_i32 : i32, i32
  }
}

</mosaic_0001>

<llo_original>
// kernel: tpu_custom_call.1
$region0: #{tpu_custom_call.1}
  #allocation0 [shape = 'u32[]', space=smem, size = 0x4, offset = 0x4, fixed_abs, tag = 'smem constant byte address 0x4 - core index']
  #allocation1 [shape = 'u32[144,128]{1,0:T(1,128)}', space=vmem, size = 0x12000, scoped, tag = 'internal scratch']
  %s0 = inlined_call_operand.vmem [shape: f32[64,8], index: 0, kind: input, shape index: {}]
  %s1 = inlined_call_operand.vmem [shape: f32[16,32], index: 1, kind: input, shape index: {}]
  %s2 = inlined_call_operand.vmem [shape: f32[11,8], index: 2, kind: input, shape index: {}]
  %s3 = inlined_call_operand.vmem [shape: f32[64,8], index: 3, kind: input, shape index: {}]
  %s4 = inlined_call_operand.vmem [shape: f32[64,8], index: 4, kind: output, shape index: {}]
  %s5 = sld [smem:[#allocation0]]
  $region49: #{tpu_custom_call.1} parent=0
    _
  %s7 = ssub.s32 1, %s5
  %s8 = scalar_select 0, %s7, %s5
  loop: start=0, step=1, limit=4
  $region2: #{tpu_custom_call.1} parent=0 // loop_pre_header
    _
  $region3: #{tpu_custom_call.1} parent=0 // loop_header
    %s10 = sphi 0, %s14
    %p11 = scmp.ge.s32.totalorder %s10, 4
    %s20 = sphi 0, %s22
    %s23 = sphi 0, %s20
    %s24 = sphi 0, %s23
    %s40 = sphi 0, %s24
    %s46 = sphi 0, %s48
    %s49 = sphi 0, %s46
    %s50 = sphi 0, %s49
    %s66 = sphi 0, %s50
    %s70 = sphi 0, %s70
    %s72 = sphi 0, %s70
    %s73 = sphi 0, %s72
    %s87 = sphi 0, %s73
    %s91 = sphi 0, %s91
    %s93 = sphi 0, %s91
    %s94 = sphi 0, %s93
    %s108 = sphi 0, %s94
    %s114 = sphi 0, %s116
    %s117 = sphi 0, %s114
    %s118 = sphi 0, %s117
    %s134 = sphi 0, %s118
  $region4: #{tpu_custom_call.1} parent=0 // loop_header_branch
    %13 = sbr.rel (%p11) target = $region8
  $region5: #{tpu_custom_call.1} parent=0 // loop_body
    %s15 = ssub.s32 %s10, 1
    %s16 = ssub.s32 %s10, 2
    %s17 = sadd.s32 %s10, 1
    %s18 = ssub.s32 %s10, %s17
    %p19 = scmp.eq.s32.totalorder %s18, 0
    %s21 = sadd.s32 %s20, 1
    %s22 = scalar_select %p19, %s20, %s21
    %p25 = pneg %p19
    %p26 = scmp.eq.s32.totalorder %s10, 1
    %p27 = por %p25, %p26
    %p28 = scmp.ne.s32.totalorder %s20, %s23
    %p29 = scmp.eq.s32.totalorder %s10, 0
    %p30 = por %p28, %p29
    %p31 = scmp.ne.s32.totalorder %s20, %s23
    %p32 = scmp.eq.s32.totalorder %s15, 1
    %p33 = por %p31, %p32
    %p34 = scmp.ne.s32.totalorder %s23, %s24
    %p35 = scmp.eq.s32.totalorder %s15, 0
    %p36 = por %p34, %p35
    %p37 = scmp.ne.s32.totalorder %s23, %s24
    %p38 = scmp.eq.s32.totalorder %s16, 1
    %p39 = por %p37, %p38
    %p41 = scmp.ne.s32.totalorder %s24, %s40
    %p42 = scmp.eq.s32.totalorder %s16, 0
    %p43 = por %p41, %p42
    %s44 = ssub.s32 %s10, %s17
    %p45 = scmp.eq.s32.totalorder %s44, 0
    %s47 = sadd.s32 %s46, 1
    %s48 = scalar_select %p45, %s46, %s47
    %p51 = pneg %p45
    %p52 = scmp.eq.s32.totalorder %s10, 1
    %p53 = por %p51, %p52
    %p54 = scmp.ne.s32.totalorder %s46, %s49
    %p55 = scmp.eq.s32.totalorder %s10, 0
    %p56 = por %p54, %p55
    %p57 = scmp.ne.s32.totalorder %s46, %s49
    %p58 = scmp.eq.s32.totalorder %s15, 1
    %p59 = por %p57, %p58
    %p60 = scmp.ne.s32.totalorder %s49, %s50
    %p61 = scmp.eq.s32.totalorder %s15, 0
    %p62 = por %p60, %p61
    %p63 = scmp.ne.s32.totalorder %s49, %s50
    %p64 = scmp.eq.s32.totalorder %s16, 1
    %p65 = por %p63, %p64
    %p67 = scmp.ne.s32.totalorder %s50, %s66
    %p68 = scmp.eq.s32.totalorder %s16, 0
    %p69 = por %p67, %p68
    %s71 = sadd.s32 %s70, 1
    %p74 = scmp.eq.s32.totalorder %s10, 1
    %p75 = scmp.ne.s32.totalorder %s70, %s72
    %p76 = scmp.eq.s32.totalorder %s10, 0
    %p77 = por %p75, %p76
    %p78 = scmp.ne.s32.totalorder %s70, %s72
    %p79 = scmp.eq.s32.totalorder %s15, 1
    %p80 = por %p78, %p79
    %p81 = scmp.ne.s32.totalorder %s72, %s73
    %p82 = scmp.eq.s32.totalorder %s15, 0
    %p83 = por %p81, %p82
    %p84 = scmp.ne.s32.totalorder %s72, %s73
    %p85 = scmp.eq.s32.totalorder %s16, 1
    %p86 = por %p84, %p85
    %p88 = scmp.ne.s32.totalorder %s73, %s87
    %p89 = scmp.eq.s32.totalorder %s16, 0
    %p90 = por %p88, %p89
    %s92 = sadd.s32 %s91, 1
    %p95 = scmp.eq.s32.totalorder %s10, 1
    %p96 = scmp.ne.s32.totalorder %s91, %s93
    %p97 = scmp.eq.s32.totalorder %s10, 0
    %p98 = por %p96, %p97
    %p99 = scmp.ne.s32.totalorder %s91, %s93
    %p100 = scmp.eq.s32.totalorder %s15, 1
    %p101 = por %p99, %p100
    %p102 = scmp.ne.s32.totalorder %s93, %s94
    %p103 = scmp.eq.s32.totalorder %s15, 0
    %p104 = por %p102, %p103
    %p105 = scmp.ne.s32.totalorder %s93, %s94
    %p106 = scmp.eq.s32.totalorder %s16, 1
    %p107 = por %p105, %p106
    %p109 = scmp.ne.s32.totalorder %s94, %s108
    %p110 = scmp.eq.s32.totalorder %s16, 0
    %p111 = por %p109, %p110
    %s112 = ssub.s32 %s10, %s17
    %p113 = scmp.eq.s32.totalorder %s112, 0
    %s115 = sadd.s32 %s114, 1
    %s116 = scalar_select %p113, %s114, %s115
    %p119 = pneg %p113
    %p120 = scmp.eq.s32.totalorder %s10, 1
    %p121 = por %p119, %p120
    %p122 = scmp.ne.s32.totalorder %s114, %s117
    %p123 = scmp.eq.s32.totalorder %s10, 0
    %p124 = por %p122, %p123
    %p125 = scmp.ne.s32.totalorder %s114, %s117
    %p126 = scmp.eq.s32.totalorder %s15, 1
    %p127 = por %p125, %p126
    %p128 = scmp.ne.s32.totalorder %s117, %s118
    %p129 = scmp.eq.s32.totalorder %s15, 0
    %p130 = por %p128, %p129
    %p131 = scmp.ne.s32.totalorder %s117, %s118
    %p132 = scmp.eq.s32.totalorder %s16, 1
    %p133 = por %p131, %p132
    %p135 = scmp.ne.s32.totalorder %s118, %s134
    %p136 = scmp.eq.s32.totalorder %s16, 0
    %p137 = por %p135, %p136
    %p138 = scmp.le.s32.totalorder 1, %s10
    %p139 = scmp.lt.s32.totalorder %s10, 3
    %p140 = pnand %p138, %p139
    %p141 = pneg %p140
    // Predicated region
    $region9: #{tpu_custom_call.1} parent=5 // pred_check
      _
    $region10: #{tpu_custom_call.1} parent=5 // pred_check_branch
      %143 = sbr.rel (%p140) target = $region12
    $region11: #{tpu_custom_call.1} parent=5 // pred_region
      %s144 = ssub.s32 %s10, 1
      // Predicated region
      $region13: #{tpu_custom_call.1} parent=11 // pred_check
        %p145 = pneg %p83
      $region14: #{tpu_custom_call.1} parent=11 // pred_check_branch
        %147 = sbr.rel (%p145) target = $region16
      $region15: #{tpu_custom_call.1} parent=11 // pred_region
        _
      $region16: #{tpu_custom_call.1} parent=11 // pred_fallthru
        _
      // Predicated region
      $region17: #{tpu_custom_call.1} parent=11 // pred_check
        %p148 = pneg %p104
      $region18: #{tpu_custom_call.1} parent=11 // pred_check_branch
        %150 = sbr.rel (%p148) target = $region20
      $region19: #{tpu_custom_call.1} parent=11 // pred_region
        _
      $region20: #{tpu_custom_call.1} parent=11 // pred_fallthru
        _
    $region12: #{tpu_custom_call.1} parent=5 // pred_fallthru
      _
    %p151 = scmp.lt.s32.totalorder %s10, 2
    // Predicated region
    $region21: #{tpu_custom_call.1} parent=5 // pred_check
      %p152 = pneg %p151
    $region22: #{tpu_custom_call.1} parent=5 // pred_check_branch
      %154 = sbr.rel (%p152) target = $region24
    $region23: #{tpu_custom_call.1} parent=5 // pred_region
      // Predicated region
      $region25: #{tpu_custom_call.1} parent=23 // pred_check
        %p155 = pneg %p30
      $region26: #{tpu_custom_call.1} parent=23 // pred_check_branch
        %157 = sbr.rel (%p155) target = $region28
      $region27: #{tpu_custom_call.1} parent=23 // pred_region
        %s158 = smul.u32 4, %s10
        %p159 = scmp.lt.s32.totalorder %s158, 7
        %s160 = scalar_select %p159, %s158, 7
        %s161 = smul.addr %s160, 8
        %s162 = scalar_lea.vmem %s0, %s161
        %s163 = smul.u32 4, %s10
      $region28: #{tpu_custom_call.1} parent=23 // pred_fallthru
        _
      // Predicated region
      $region29: #{tpu_custom_call.1} parent=23 // pred_check
        %p164 = pneg %p56
      $region30: #{tpu_custom_call.1} parent=23 // pred_check_branch
        %166 = sbr.rel (%p164) target = $region32
      $region31: #{tpu_custom_call.1} parent=23 // pred_region
        %p167 = scmp.lt.s32.totalorder %s10, 1
        %s168 = scalar_select %p167, %s10, 1
        %s169 = smul.addr %s168, 8
        %s170 = scalar_lea.vmem %s1, %s169
      $region32: #{tpu_custom_call.1} parent=23 // pred_fallthru
        _
    $region24: #{tpu_custom_call.1} parent=5 // pred_fallthru
      _
    %p171 = scmp.le.s32.totalorder 1, %s10
    %p172 = scmp.lt.s32.totalorder %s10, 3
    %p173 = pnand %p171, %p172
    %p174 = pneg %p173
    // Predicated region
    $region33: #{tpu_custom_call.1} parent=5 // pred_check
      _
    $region34: #{tpu_custom_call.1} parent=5 // pred_check_branch
      %176 = sbr.rel (%p173) target = $region36
    $region35: #{tpu_custom_call.1} parent=5 // pred_region
      %s177 = ssub.s32 %s10, 1
      %s178 = smul.u32 4, %s15
      %p179 = scmp.lt.s32.totalorder %s178, 7
      %s180 = scalar_select %p179, %s178, 7
      %s181 = smul.addr %s180, 8
      %s182 = scalar_lea.vmem %s0, %s181
      %p183 = pneg %p36
      %p184 = pneg %p33
      %p185 = scmp.lt.s32.totalorder %s15, 1
      %s186 = scalar_select %p185, %s15, 1
      %s187 = smul.addr %s186, 8
      %s188 = scalar_lea.vmem %s1, %s187
      %p189 = pneg %p62
      %p190 = pneg %p59
      %p191 = pneg %p83
      %p192 = pneg %p80
      %p193 = pneg %p104
      %p194 = pneg %p101
      %p195 = pneg %p130
      %p196 = pneg %p127
      %s197 = smul.u32 4, %s15
      %p198 = scmp.lt.s32.totalorder %s197, 7
      %s199 = scalar_select %p198, %s197, 7
      %s200 = smul.addr %s199, 8
      %s201 = scalar_lea.vmem %s4, %s200
      %s202 = smul.u32 4, %s15
      %p203 = scmp.lt.s32.totalorder %s202, 7
      %s204 = scalar_select %p203, %s202, 7
      %s205 = smul.addr %s204, 8
      %s206 = scalar_lea.vmem %s0, %s205
      %s207 = smul.u32 4, %s15
      %p208 = scmp.lt.s32.totalorder %s15, 1
      %s209 = scalar_select %p208, %s15, 1
      %s210 = smul.addr %s209, 8
      %s211 = scalar_lea.vmem %s1, %s210
      %s212 = smul.u32 4, %s15
      %p213 = scmp.lt.s32.totalorder %s212, 7
      %s214 = scalar_select %p213, %s212, 7
      %s215 = smul.addr %s214, 8
      %s216 = scalar_lea.vmem %s4, %s215
      %s217 = smul.u32 4, %s15
      %v218 = vld [vmem:[%s2] sm:$0x1]
      %v219 = vld [vmem:[%s2 + $0x1] sm:$0x1]
      %v220 = vld [vmem:[%s2 + $0x2] sm:$0x1]
      %v221 = vld [vmem:[%s2 + $0x3] sm:$0x1]
      %v222 = vld [vmem:[%s2 + $0x4] sm:$0x1]
      %v223 = vld [vmem:[%s2 + $0x5] sm:$0x1]
      %v224 = vld [vmem:[%s2 + $0x6] sm:$0x1]
      %v225 = vld [vmem:[%s2 + $0x7] sm:$0x1]
      %v226 = vld [vmem:[%s2 + $0x8] sm:$0x1]
      %v227 = vld [vmem:[%s2 + $0x9] sm:$0x1]
      %v228 = vld [vmem:[%s2 + $0xa] sm:$0x1]
      %v229 = vld [vmem:[%s3] sm:$0xff]
      %v230 = vld [vmem:[%s3 + $0x28] sm:$0xf]
      %v231 = vld [vmem:[%s3 + $0x30] sm:$0xff]
      %v232 = vld [vmem:[%s3 + $0x38] sm:$0xf]
      %v233 = vld [vmem:[%s206] sm:$0xff]
      %v234 = vld [vmem:[%s206 + $0x8] sm:$0xff]
      %v235 = vld [vmem:[%s206 + $0x10] sm:$0xff]
      %v236 = vld [vmem:[%s206 + $0x18] sm:$0xff]
      %vm237 = vcmask 64512
      %v238 = vsel %vm237, %v233, 0.0
      %239 = vadd.xlane.f32.xlu0 %v238
      %v240 = vpop.xlane.xlu0 %239
      %v241 = vsel %vm237, %v234, 0.0
      %242 = vadd.xlane.f32.xlu0 %v241
      %v243 = vpop.xlane.xlu0 %242
      %v244 = vsel %vm237, %v235, 0.0
      %245 = vadd.xlane.f32.xlu0 %v244
      %v246 = vpop.xlane.xlu0 %245
      %v247 = vsel %vm237, %v236, 0.0
      %248 = vadd.xlane.f32.xlu0 %v247
      %v249 = vpop.xlane.xlu0 %248
      %v250 = vrcp.pop 8.0
      %v251 = vmul.f32 %v240, %v250
      %v252 = vmul.f32 %v243, %v250
      %v253 = vmul.f32 %v246, %v250
      %v254 = vmul.f32 %v249, %v250
      %v255 = vsub.f32 %v233, %v251
      %v256 = vsub.f32 %v234, %v252
      %v257 = vsub.f32 %v235, %v253
      %v258 = vsub.f32 %v236, %v254
      %v259 = vmul.f32 %v255, %v255
      %v260 = vmul.f32 %v256, %v256
      %v261 = vmul.f32 %v257, %v257
      %v262 = vmul.f32 %v258, %v258
      %v263 = vsel %vm237, %v259, 0.0
      %264 = vadd.xlane.f32.xlu0 %v263
      %v265 = vpop.xlane.xlu0 %264
      %v266 = vsel %vm237, %v260, 0.0
      %267 = vadd.xlane.f32.xlu0 %v266
      %v268 = vpop.xlane.xlu0 %267
      %v269 = vsel %vm237, %v261, 0.0
      %270 = vadd.xlane.f32.xlu0 %v269
      %v271 = vpop.xlane.xlu0 %270
      %v272 = vsel %vm237, %v262, 0.0
      %273 = vadd.xlane.f32.xlu0 %v272
      %v274 = vpop.xlane.xlu0 %273
      %v275 = vmul.f32 %v265, %v250
      %v276 = vmul.f32 %v268, %v250
      %v277 = vmul.f32 %v271, %v250
      %v278 = vmul.f32 %v274, %v250
      %v279 = vadd.f32 %v275, 1e-05
      %v280 = vadd.f32 %v276, 1e-05
      %v281 = vadd.f32 %v277, 1e-05
      %v282 = vadd.f32 %v278, 1e-05
      %v283 = vrsqrt.pop %v279
      %v284 = vrsqrt.pop %v280
      %v285 = vrsqrt.pop %v281
      %v286 = vrsqrt.pop %v282
      %v287 = vmul.f32 %v255, %v283
      %v288 = vmul.f32 %v256, %v284
      %v289 = vmul.f32 %v257, %v285
      %v290 = vmul.f32 %v258, %v286
      %v291 = vlaneseq
      %v292 = vshrl.u32 %v291, 7
      %v293 = vsub.s32 0, %v292
      %v294 = vrot.slane %v218, %v293
      %v295 = vmul.f32 %v287, %v294
      %v296 = vmul.f32 %v288, %v294
      %v297 = vmul.f32 %v289, %v294
      %v298 = vmul.f32 %v290, %v294
      %v299 = vlaneseq
      %v300 = vshrl.u32 %v299, 7
      %v301 = vsub.s32 0, %v300
      %v302 = vrot.slane %v219, %v301
      %v303 = vadd.f32 %v295, %v302
      %v304 = vadd.f32 %v296, %v302
      %v305 = vadd.f32 %v297, %v302
      %v306 = vadd.f32 %v298, %v302
      %v307 = vld [vmem:[%s211] sm:$0xff]
      %v308 = vld [vmem:[%s3 + $0x8] sm:$0xff]
      %v309 = vsel %vm237, %v307, 0.0
      %310 = vadd.xlane.f32.xlu0 %v309
      %v311 = vpop.xlane.xlu0 %310
      %v312 = vmul.f32 %v311, %v250
      %v313 = vsub.f32 %v307, %v312
      %v314 = vmul.f32 %v313, %v313
      %v315 = vsel %vm237, %v314, 0.0
      %316 = vadd.xlane.f32.xlu0 %v315
      %v317 = vpop.xlane.xlu0 %316
      %v318 = vmul.f32 %v317, %v250
      %v319 = vadd.f32 %v318, 1e-05
      %v320 = vrsqrt.pop %v319
      %v321 = vmul.f32 %v313, %v320
      %v322 = vmul.f32 %v321, %v294
      %v323 = vadd.f32 %v322, %v302
      %v324 = vld [vmem:[%s3 + $0x10] sm:$0xff]
      %326 = vrot.lane.b32.xlu0 %v307, 120
      %v327 = vpop.permute.xlu0 %326
      %v329 = vsel %vm237, %v327, 0.0
      %330 = vadd.xlane.f32.xlu0 %v329
      %v331 = vpop.xlane.xlu0 %330
      %v332 = vmul.f32 %v331, %v250
      %v333 = vsub.f32 %v307, %v332
      %v334 = vmul.f32 %v333, %v333
      %336 = vrot.lane.b32.xlu0 %v334, 120
      %v337 = vpop.permute.xlu0 %336
      %v339 = vsel %vm237, %v337, 0.0
      %340 = vadd.xlane.f32.xlu0 %v339
      %v341 = vpop.xlane.xlu0 %340
      %v342 = vmul.f32 %v341, %v250
      %v343 = vadd.f32 %v342, 1e-05
      %v344 = vrsqrt.pop %v343
      %v345 = vmul.f32 %v333, %v344
      %347 = vrot.lane.b32.xlu0 %v294, 8
      %v348 = vpop.permute.xlu0 %347
      %v350 = vmul.f32 %v345, %v348
      %352 = vrot.lane.b32.xlu0 %v302, 8
      %v353 = vpop.permute.xlu0 %352
      %v355 = vadd.f32 %v350, %v353
      %357 = vrot.lane.b32.xlu0 %v355, 120
      %v358 = vpop.permute.xlu0 %357
      %v359 = vsel %vm237, %v358, 0
      %361 = vmatprep.subr.mxu0 0.0
      %362 = vmatpush1.msra.mxu0 %v324
      %363 = vmatprep.subr.mxu0 0.0
      %364 = vmatpush1.msra.mxu0 0.0
      %365 = vmatprep.subr.mxu0 0.0
      %366 = vmatpush1.msra.mxu0 0.0
      %367 = vmatprep.subr.mxu0 0.0
      %368 = vmatpush1.msra.mxu0 0.0
      %369 = vmatprep.subr.mxu0 0.0
      %370 = vmatpush1.msra.mxu0 0.0
      %371 = vmatprep.subr.mxu0 0.0
      %372 = vmatpush1.msra.mxu0 0.0
      %373 = vmatprep.subr.mxu0 0.0
      %374 = vmatpush1.msra.mxu0 0.0
      %375 = vmatprep.subr.mxu0 0.0
      %376 = vmatpush1.msra.mxu0 0.0
      %377 = vmatprep.subr.mxu0 0.0
      %378 = vmatpush1.msra.mxu0 0.0
      %379 = vmatprep.subr.mxu0 0.0
      %380 = vmatpush1.msra.mxu0 0.0
      %381 = vmatprep.subr.mxu0 0.0
      %382 = vmatpush1.msra.mxu0 0.0
      %383 = vmatprep.subr.mxu0 0.0
      %384 = vmatpush1.msra.mxu0 0.0
      %385 = vmatprep.subr.mxu0 0.0
      %386 = vmatpush1.msra.mxu0 0.0
      %387 = vmatprep.subr.mxu0 0.0
      %388 = vmatpush1.msra.mxu0 0.0
      %389 = vmatprep.subr.mxu0 0.0
      %390 = vmatpush1.msra.mxu0 0.0
      %391 = vmatprep.subr.mxu0 0.0
      %392 = vmatpush1.msra.mxu0 0.0
      %393 = vmatprep.subr.mxu0 0.0
      %394 = vmatpush1.msra.mxu0 0.0
      %395 = vmatprep.subr.mxu0 0.0
      %396 = vmatpush1.msra.mxu0 0.0
      %397 = vmatprep.subr.mxu0 0.0
      %398 = vmatpush1.msra.mxu0 0.0
      %399 = vmatprep.subr.mxu0 0.0
      %400 = vmatpush1.msra.mxu0 0.0
      %401 = vmatprep.subr.mxu0 0.0
      %402 = vmatpush1.msra.mxu0 0.0
      %403 = vmatprep.subr.mxu0 0.0
      %404 = vmatpush1.msra.mxu0 0.0
      %405 = vmatprep.subr.mxu0 0.0
      %406 = vmatpush1.msra.mxu0 0.0
      %407 = vmatprep.subr.mxu0 0.0
      %408 = vmatpush1.msra.mxu0 0.0
      %409 = vmatprep.subr.mxu0 0.0
      %410 = vmatpush1.msra.mxu0 0.0
      %411 = vmatprep.subr.mxu0 0.0
      %412 = vmatpush1.msra.mxu0 0.0
      %413 = vmatprep.subr.mxu0 0.0
      %414 = vmatpush1.msra.mxu0 0.0
      %415 = vmatprep.subr.mxu0 0.0
      %416 = vmatpush1.msra.mxu0 0.0
      %417 = vmatprep.subr.mxu0 0.0
      %418 = vmatpush1.msra.mxu0 0.0
      %419 = vmatprep.subr.mxu0 0.0
      %420 = vmatpush1.msra.mxu0 0.0
      %421 = vmatprep.subr.mxu0 0.0
      %422 = vmatpush1.msra.mxu0 0.0
      %423 = vmatprep.subr.mxu0 0.0
      %424 = vmatpush1.msra.mxu0 0.0
      %425 = vmatprep.mubr.f32.mxu0 0.0
      %426 = vmatmul.mubr.f32.gmra.mrb[0].mxu0 %v359
      %v427 = vpop.f32.mrb[0].mxu0
      %v428 = vadd.f32 0.0, %v427
      %v429 = vpop.f32.mrb[0].mxu0
      %430 = vdwg.mxu0
      %v432 = vsel %vm237, %v323, 0
      %434 = vmatprep.subr.mxu0 0.0
      %435 = vmatpush1.msra.mxu0 %v308
      %436 = vmatprep.subr.mxu0 0.0
      %437 = vmatpush1.msra.mxu0 0.0
      %438 = vmatprep.subr.mxu0 0.0
      %439 = vmatpush1.msra.mxu0 0.0
      %440 = vmatprep.subr.mxu0 0.0
      %441 = vmatpush1.msra.mxu0 0.0
      %442 = vmatprep.subr.mxu0 0.0
      %443 = vmatpush1.msra.mxu0 0.0
      %444 = vmatprep.subr.mxu0 0.0
      %445 = vmatpush1.msra.mxu0 0.0
      %446 = vmatprep.subr.mxu0 0.0
      %447 = vmatpush1.msra.mxu0 0.0
      %448 = vmatprep.subr.mxu0 0.0
      %449 = vmatpush1.msra.mxu0 0.0
      %450 = vmatprep.subr.mxu0 0.0
      %451 = vmatpush1.msra.mxu0 0.0
      %452 = vmatprep.subr.mxu0 0.0
      %453 = vmatpush1.msra.mxu0 0.0
      %454 = vmatprep.subr.mxu0 0.0
      %455 = vmatpush1.msra.mxu0 0.0
      %456 = vmatprep.subr.mxu0 0.0
      %457 = vmatpush1.msra.mxu0 0.0
      %458 = vmatprep.subr.mxu0 0.0
      %459 = vmatpush1.msra.mxu0 0.0
      %460 = vmatprep.subr.mxu0 0.0
      %461 = vmatpush1.msra.mxu0 0.0
      %462 = vmatprep.subr.mxu0 0.0
      %463 = vmatpush1.msra.mxu0 0.0
      %464 = vmatprep.subr.mxu0 0.0
      %465 = vmatpush1.msra.mxu0 0.0
      %466 = vmatprep.subr.mxu0 0.0
      %467 = vmatpush1.msra.mxu0 0.0
      %468 = vmatprep.subr.mxu0 0.0
      %469 = vmatpush1.msra.mxu0 0.0
      %470 = vmatprep.subr.mxu0 0.0
      %471 = vmatpush1.msra.mxu0 0.0
      %472 = vmatprep.subr.mxu0 0.0
      %473 = vmatpush1.msra.mxu0 0.0
      %474 = vmatprep.subr.mxu0 0.0
      %475 = vmatpush1.msra.mxu0 0.0
      %476 = vmatprep.subr.mxu0 0.0
      %477 = vmatpush1.msra.mxu0 0.0
      %478 = vmatprep.subr.mxu0 0.0
      %479 = vmatpush1.msra.mxu0 0.0
      %480 = vmatprep.subr.mxu0 0.0
      %481 = vmatpush1.msra.mxu0 0.0
      %482 = vmatprep.subr.mxu0 0.0
      %483 = vmatpush1.msra.mxu0 0.0
      %484 = vmatprep.subr.mxu0 0.0
      %485 = vmatpush1.msra.mxu0 0.0
      %486 = vmatprep.subr.mxu0 0.0
      %487 = vmatpush1.msra.mxu0 0.0
      %488 = vmatprep.subr.mxu0 0.0
      %489 = vmatpush1.msra.mxu0 0.0
      %490 = vmatprep.subr.mxu0 0.0
      %491 = vmatpush1.msra.mxu0 0.0
      %492 = vmatprep.subr.mxu0 0.0
      %493 = vmatpush1.msra.mxu0 0.0
      %494 = vmatprep.subr.mxu0 0.0
      %495 = vmatpush1.msra.mxu0 0.0
      %496 = vmatprep.subr.mxu0 0.0
      %497 = vmatpush1.msra.mxu0 0.0
      %498 = vmatprep.mubr.f32.mxu0 0.0
      %499 = vmatmul.mubr.f32.gmra.mrb[0].mxu0 %v432
      %v500 = vpop.f32.mrb[0].mxu0
      %v501 = vadd.f32 %v428, %v500
      %v502 = vpop.f32.mrb[0].mxu0
      %503 = vdwg.mxu0
      %v504 = vld [vmem:[%s3 + $0x18] sm:$0xff]
      %505 = vrot.lane.b32.xlu0 %v307, 112
      %v506 = vpop.permute.xlu0 %505
      %v508 = vsel %vm237, %v506, 0.0
      %509 = vadd.xlane.f32.xlu0 %v508
      %v510 = vpop.xlane.xlu0 %509
      %v511 = vmul.f32 %v510, %v250
      %v512 = vsub.f32 %v307, %v511
      %v513 = vmul.f32 %v512, %v512
      %515 = vrot.lane.b32.xlu0 %v513, 112
      %v516 = vpop.permute.xlu0 %515
      %v518 = vsel %vm237, %v516, 0.0
      %519 = vadd.xlane.f32.xlu0 %v518
      %v520 = vpop.xlane.xlu0 %519
      %v521 = vmul.f32 %v520, %v250
      %v522 = vadd.f32 %v521, 1e-05
      %v523 = vrsqrt.pop %v522
      %v524 = vmul.f32 %v512, %v523
      %525 = vrot.lane.b32.xlu0 %v294, 16
      %v526 = vpop.permute.xlu0 %525
      %v528 = vmul.f32 %v524, %v526
      %529 = vrot.lane.b32.xlu0 %v302, 16
      %v530 = vpop.permute.xlu0 %529
      %v532 = vadd.f32 %v528, %v530
      %534 = vrot.lane.b32.xlu0 %v532, 112
      %v535 = vpop.permute.xlu0 %534
      %v536 = vsel %vm237, %v535, 0
      %538 = vmatprep.subr.mxu0 0.0
      %539 = vmatpush1.msra.mxu0 %v504
      %540 = vmatprep.subr.mxu0 0.0
      %541 = vmatpush1.msra.mxu0 0.0
      %542 = vmatprep.subr.mxu0 0.0
      %543 = vmatpush1.msra.mxu0 0.0
      %544 = vmatprep.subr.mxu0 0.0
      %545 = vmatpush1.msra.mxu0 0.0
      %546 = vmatprep.subr.mxu0 0.0
      %547 = vmatpush1.msra.mxu0 0.0
      %548 = vmatprep.subr.mxu0 0.0
      %549 = vmatpush1.msra.mxu0 0.0
      %550 = vmatprep.subr.mxu0 0.0
      %551 = vmatpush1.msra.mxu0 0.0
      %552 = vmatprep.subr.mxu0 0.0
      %553 = vmatpush1.msra.mxu0 0.0
      %554 = vmatprep.subr.mxu0 0.0
      %555 = vmatpush1.msra.mxu0 0.0
      %556 = vmatprep.subr.mxu0 0.0
      %557 = vmatpush1.msra.mxu0 0.0
      %558 = vmatprep.subr.mxu0 0.0
      %559 = vmatpush1.msra.mxu0 0.0
      %560 = vmatprep.subr.mxu0 0.0
      %561 = vmatpush1.msra.mxu0 0.0
      %562 = vmatprep.subr.mxu0 0.0
      %563 = vmatpush1.msra.mxu0 0.0
      %564 = vmatprep.subr.mxu0 0.0
      %565 = vmatpush1.msra.mxu0 0.0
      %566 = vmatprep.subr.mxu0 0.0
      %567 = vmatpush1.msra.mxu0 0.0
      %568 = vmatprep.subr.mxu0 0.0
      %569 = vmatpush1.msra.mxu0 0.0
      %570 = vmatprep.subr.mxu0 0.0
      %571 = vmatpush1.msra.mxu0 0.0
      %572 = vmatprep.subr.mxu0 0.0
      %573 = vmatpush1.msra.mxu0 0.0
      %574 = vmatprep.subr.mxu0 0.0
      %575 = vmatpush1.msra.mxu0 0.0
      %576 = vmatprep.subr.mxu0 0.0
      %577 = vmatpush1.msra.mxu0 0.0
      %578 = vmatprep.subr.mxu0 0.0
      %579 = vmatpush1.msra.mxu0 0.0
      %580 = vmatprep.subr.mxu0 0.0
      %581 = vmatpush1.msra.mxu0 0.0
      %582 = vmatprep.subr.mxu0 0.0
      %583 = vmatpush1.msra.mxu0 0.0
      %584 = vmatprep.subr.mxu0 0.0
      %585 = vmatpush1.msra.mxu0 0.0
      %586 = vmatprep.subr.mxu0 0.0
      %587 = vmatpush1.msra.mxu0 0.0
      %588 = vmatprep.subr.mxu0 0.0
      %589 = vmatpush1.msra.mxu0 0.0
      %590 = vmatprep.subr.mxu0 0.0
      %591 = vmatpush1.msra.mxu0 0.0
      %592 = vmatprep.subr.mxu0 0.0
      %593 = vmatpush1.msra.mxu0 0.0
      %594 = vmatprep.subr.mxu0 0.0
      %595 = vmatpush1.msra.mxu0 0.0
      %596 = vmatprep.subr.mxu0 0.0
      %597 = vmatpush1.msra.mxu0 0.0
      %598 = vmatprep.subr.mxu0 0.0
      %599 = vmatpush1.msra.mxu0 0.0
      %600 = vmatprep.subr.mxu0 0.0
      %601 = vmatpush1.msra.mxu0 0.0
      %602 = vmatprep.mubr.f32.mxu0 0.0
      %603 = vmatmul.mubr.f32.gmra.mrb[0].mxu0 %v536
      %v604 = vpop.f32.mrb[0].mxu0
      %v605 = vadd.f32 0.0, %v604
      %v606 = vpop.f32.mrb[0].mxu0
      %607 = vdwg.mxu0
      %v608 = vadd.f32 %v501, %v605
      %v609 = vld [vmem:[%s3 + $0x20] sm:$0xff]
      %610 = vrot.lane.b32.xlu0 %v307, 104
      %v611 = vpop.permute.xlu0 %610
      %v613 = vsel %vm237, %v611, 0.0
      %614 = vadd.xlane.f32.xlu0 %v613
      %v615 = vpop.xlane.xlu0 %614
      %v616 = vmul.f32 %v615, %v250
      %v617 = vsub.f32 %v307, %v616
      %v618 = vmul.f32 %v617, %v617
      %620 = vrot.lane.b32.xlu0 %v618, 104
      %v621 = vpop.permute.xlu0 %620
      %v623 = vsel %vm237, %v621, 0.0
      %624 = vadd.xlane.f32.xlu0 %v623
      %v625 = vpop.xlane.xlu0 %624
      %v626 = vmul.f32 %v625, %v250
      %v627 = vadd.f32 %v626, 1e-05
      %v628 = vrsqrt.pop %v627
      %v629 = vmul.f32 %v617, %v628
      %630 = vrot.lane.b32.xlu0 %v294, 24
      %v631 = vpop.permute.xlu0 %630
      %v633 = vmul.f32 %v629, %v631
      %634 = vrot.lane.b32.xlu0 %v302, 24
      %v635 = vpop.permute.xlu0 %634
      %v637 = vadd.f32 %v633, %v635
      %639 = vrot.lane.b32.xlu0 %v637, 104
      %v640 = vpop.permute.xlu0 %639
      %v641 = vsel %vm237, %v640, 0
      %643 = vmatprep.subr.mxu0 0.0
      %644 = vmatpush1.msra.mxu0 %v609
      %645 = vmatprep.subr.mxu0 0.0
      %646 = vmatpush1.msra.mxu0 0.0
      %647 = vmatprep.subr.mxu0 0.0
      %648 = vmatpush1.msra.mxu0 0.0
      %649 = vmatprep.subr.mxu0 0.0
      %650 = vmatpush1.msra.mxu0 0.0
      %651 = vmatprep.subr.mxu0 0.0
      %652 = vmatpush1.msra.mxu0 0.0
      %653 = vmatprep.subr.mxu0 0.0
      %654 = vmatpush1.msra.mxu0 0.0
      %655 = vmatprep.subr.mxu0 0.0
      %656 = vmatpush1.msra.mxu0 0.0
      %657 = vmatprep.subr.mxu0 0.0
      %658 = vmatpush1.msra.mxu0 0.0
      %659 = vmatprep.subr.mxu0 0.0
      %660 = vmatpush1.msra.mxu0 0.0
      %661 = vmatprep.subr.mxu0 0.0
      %662 = vmatpush1.msra.mxu0 0.0
      %663 = vmatprep.subr.mxu0 0.0
      %664 = vmatpush1.msra.mxu0 0.0
      %665 = vmatprep.subr.mxu0 0.0
      %666 = vmatpush1.msra.mxu0 0.0
      %667 = vmatprep.subr.mxu0 0.0
      %668 = vmatpush1.msra.mxu0 0.0
      %669 = vmatprep.subr.mxu0 0.0
      %670 = vmatpush1.msra.mxu0 0.0
      %671 = vmatprep.subr.mxu0 0.0
      %672 = vmatpush1.msra.mxu0 0.0
      %673 = vmatprep.subr.mxu0 0.0
      %674 = vmatpush1.msra.mxu0 0.0
      %675 = vmatprep.subr.mxu0 0.0
      %676 = vmatpush1.msra.mxu0 0.0
      %677 = vmatprep.subr.mxu0 0.0
      %678 = vmatpush1.msra.mxu0 0.0
      %679 = vmatprep.subr.mxu0 0.0
      %680 = vmatpush1.msra.mxu0 0.0
      %681 = vmatprep.subr.mxu0 0.0
      %682 = vmatpush1.msra.mxu0 0.0
      %683 = vmatprep.subr.mxu0 0.0
      %684 = vmatpush1.msra.mxu0 0.0
      %685 = vmatprep.subr.mxu0 0.0
      %686 = vmatpush1.msra.mxu0 0.0
      %687 = vmatprep.subr.mxu0 0.0
      %688 = vmatpush1.msra.mxu0 0.0
      %689 = vmatprep.subr.mxu0 0.0
      %690 = vmatpush1.msra.mxu0 0.0
      %691 = vmatprep.subr.mxu0 0.0
      %692 = vmatpush1.msra.mxu0 0.0
      %693 = vmatprep.subr.mxu0 0.0
      %694 = vmatpush1.msra.mxu0 0.0
      %695 = vmatprep.subr.mxu0 0.0
      %696 = vmatpush1.msra.mxu0 0.0
      %697 = vmatprep.subr.mxu0 0.0
      %698 = vmatpush1.msra.mxu0 0.0
      %699 = vmatprep.subr.mxu0 0.0
      %700 = vmatpush1.msra.mxu0 0.0
      %701 = vmatprep.subr.mxu0 0.0
      %702 = vmatpush1.msra.mxu0 0.0
      %703 = vmatprep.subr.mxu0 0.0
      %704 = vmatpush1.msra.mxu0 0.0
      %705 = vmatprep.subr.mxu0 0.0
      %706 = vmatpush1.msra.mxu0 0.0
      %707 = vmatprep.mubr.f32.mxu0 0.0
      %708 = vmatmul.mubr.f32.gmra.mrb[0].mxu0 %v641
      %v709 = vpop.f32.mrb[0].mxu0
      %v710 = vadd.f32 0.0, %v709
      %v711 = vpop.f32.mrb[0].mxu0
      %712 = vdwg.mxu0
      %v713 = vadd.f32 %v608, %v710
      %v714 = vlaneseq
      %v715 = vshrl.u32 %v714, 7
      %v716 = vsub.s32 0, %v715
      %v717 = vrot.slane %v220, %v716
      %v718 = vadd.f32 %v713, %v717
      %v719 = vsel %vm237, %v718, 0.0
      %720 = vadd.xlane.f32.xlu0 %v719
      %v721 = vpop.xlane.xlu0 %720
      %v722 = vmul.f32 %v721, %v250
      %v723 = vsub.f32 %v718, %v722
      %v724 = vmul.f32 %v723, %v723
      %v725 = vsel %vm237, %v724, 0.0
      %726 = vadd.xlane.f32.xlu0 %v725
      %v727 = vpop.xlane.xlu0 %726
      %v728 = vmul.f32 %v727, %v250
      %v729 = vadd.f32 %v728, 1e-05
      %v730 = vrsqrt.pop %v729
      %v731 = vmul.f32 %v723, %v730
      %v732 = vlaneseq
      %v733 = vshrl.u32 %v732, 7
      %v734 = vsub.s32 0, %v733
      %v735 = vrot.slane %v221, %v734
      %v736 = vmul.f32 %v731, %v735
      %v737 = vlaneseq
      %v738 = vshrl.u32 %v737, 7
      %v739 = vsub.s32 0, %v738
      %v740 = vrot.slane %v222, %v739
      %v741 = vadd.f32 %v736, %v740
      %v742 = vlaneseq
      %v743 = vshrl.u32 %v742, 7
      %v744 = vsub.s32 0, %v743
      %v745 = vrot.slane %v227, %v744
      %v747 = vsel %vm237, %v303, 0
      %v750 = vsel %vm237, %v304, 0
      %v753 = vsel %vm237, %v305, 0
      %v756 = vsel %vm237, %v306, 0
      %758 = vmatprep.subr.mxu0 0.0
      %759 = vmatpush1.msra.mxu0 %v229
      %760 = vmatprep.subr.mxu0 0.0
      %761 = vmatpush1.msra.mxu0 0.0
      %762 = vmatprep.subr.mxu0 0.0
      %763 = vmatpush1.msra.mxu0 0.0
      %764 = vmatprep.subr.mxu0 0.0
      %765 = vmatpush1.msra.mxu0 0.0
      %766 = vmatprep.subr.mxu0 0.0
      %767 = vmatpush1.msra.mxu0 0.0
      %768 = vmatprep.subr.mxu0 0.0
      %769 = vmatpush1.msra.mxu0 0.0
      %770 = vmatprep.subr.mxu0 0.0
      %771 = vmatpush1.msra.mxu0 0.0
      %772 = vmatprep.subr.mxu0 0.0
      %773 = vmatpush1.msra.mxu0 0.0
      %774 = vmatprep.subr.mxu0 0.0
      %775 = vmatpush1.msra.mxu0 0.0
      %776 = vmatprep.subr.mxu0 0.0
      %777 = vmatpush1.msra.mxu0 0.0
      %778 = vmatprep.subr.mxu0 0.0
      %779 = vmatpush1.msra.mxu0 0.0
      %780 = vmatprep.subr.mxu0 0.0
      %781 = vmatpush1.msra.mxu0 0.0
      %782 = vmatprep.subr.mxu0 0.0
      %783 = vmatpush1.msra.mxu0 0.0
      %784 = vmatprep.subr.mxu0 0.0
      %785 = vmatpush1.msra.mxu0 0.0
      %786 = vmatprep.subr.mxu0 0.0
      %787 = vmatpush1.msra.mxu0 0.0
      %788 = vmatprep.subr.mxu0 0.0
      %789 = vmatpush1.msra.mxu0 0.0
      %790 = vmatprep.subr.mxu0 0.0
      %791 = vmatpush1.msra.mxu0 0.0
      %792 = vmatprep.subr.mxu0 0.0
      %793 = vmatpush1.msra.mxu0 0.0
      %794 = vmatprep.subr.mxu0 0.0
      %795 = vmatpush1.msra.mxu0 0.0
      %796 = vmatprep.subr.mxu0 0.0
      %797 = vmatpush1.msra.mxu0 0.0
      %798 = vmatprep.subr.mxu0 0.0
      %799 = vmatpush1.msra.mxu0 0.0
      %800 = vmatprep.subr.mxu0 0.0
      %801 = vmatpush1.msra.mxu0 0.0
      %802 = vmatprep.subr.mxu0 0.0
      %803 = vmatpush1.msra.mxu0 0.0
      %804 = vmatprep.subr.mxu0 0.0
      %805 = vmatpush1.msra.mxu0 0.0
      %806 = vmatprep.subr.mxu0 0.0
      %807 = vmatpush1.msra.mxu0 0.0
      %808 = vmatprep.subr.mxu0 0.0
      %809 = vmatpush1.msra.mxu0 0.0
      %810 = vmatprep.subr.mxu0 0.0
      %811 = vmatpush1.msra.mxu0 0.0
      %812 = vmatprep.subr.mxu0 0.0
      %813 = vmatpush1.msra.mxu0 0.0
      %814 = vmatprep.subr.mxu0 0.0
      %815 = vmatpush1.msra.mxu0 0.0
      %816 = vmatprep.subr.mxu0 0.0
      %817 = vmatpush1.msra.mxu0 0.0
      %818 = vmatprep.subr.mxu0 0.0
      %819 = vmatpush1.msra.mxu0 0.0
      %820 = vmatprep.subr.mxu0 0.0
      %821 = vmatpush1.msra.mxu0 0.0
      %822 = vmatprep.mubr.f32.mxu0 0.0
      %823 = vmatmul.mubr.f32.gmra.mrb[0].mxu0 %v747
      %v824 = vpop.f32.mrb[0].mxu0
      %v825 = vadd.f32 %v745, %v824
      %v826 = vpop.f32.mrb[0].mxu0
      %827 = vmatprep.mubr.f32.mxu0 0.0
      %828 = vmatmul.mubr.f32.gmra.mrb[0].mxu0 %v750
      %v829 = vpop.f32.mrb[0].mxu0
      %v830 = vadd.f32 %v745, %v829
      %v831 = vpop.f32.mrb[0].mxu0
      %832 = vmatprep.mubr.f32.mxu0 0.0
      %833 = vmatmul.mubr.f32.gmra.mrb[0].mxu0 %v753
      %v834 = vpop.f32.mrb[0].mxu0
      %v835 = vadd.f32 %v745, %v834
      %v836 = vpop.f32.mrb[0].mxu0
      %837 = vmatprep.mubr.f32.mxu0 0.0
      %838 = vmatmul.mubr.f32.gmra.mrb[0].mxu0 %v756
      %v839 = vpop.f32.mrb[0].mxu0
      %v840 = vadd.f32 %v745, %v839
      %v841 = vpop.f32.mrb[0].mxu0
      %842 = vdwg.mxu0
      %v843 = vmul.f32 %v825, 0.5
      %v844 = vmul.f32 %v830, 0.5
      %v845 = vmul.f32 %v835, 0.5
      %v846 = vmul.f32 %v840, 0.5
      %v848 = vsel %vm237, %v741, 0
      %850 = vmatprep.subr.mxu0 0.0
      %851 = vmatpush1.msra.mxu0 %v229
      %852 = vmatprep.subr.mxu0 0.0
      %853 = vmatpush1.msra.mxu0 0.0
      %854 = vmatprep.subr.mxu0 0.0
      %855 = vmatpush1.msra.mxu0 0.0
      %856 = vmatprep.subr.mxu0 0.0
      %857 = vmatpush1.msra.mxu0 0.0
      %858 = vmatprep.subr.mxu0 0.0
      %859 = vmatpush1.msra.mxu0 0.0
      %860 = vmatprep.subr.mxu0 0.0
      %861 = vmatpush1.msra.mxu0 0.0
      %862 = vmatprep.subr.mxu0 0.0
      %863 = vmatpush1.msra.mxu0 0.0
      %864 = vmatprep.subr.mxu0 0.0
      %865 = vmatpush1.msra.mxu0 0.0
      %866 = vmatprep.subr.mxu0 0.0
      %867 = vmatpush1.msra.mxu0 0.0
      %868 = vmatprep.subr.mxu0 0.0
      %869 = vmatpush1.msra.mxu0 0.0
      %870 = vmatprep.subr.mxu0 0.0
      %871 = vmatpush1.msra.mxu0 0.0
      %872 = vmatprep.subr.mxu0 0.0
      %873 = vmatpush1.msra.mxu0 0.0
      %874 = vmatprep.subr.mxu0 0.0
      %875 = vmatpush1.msra.mxu0 0.0
      %876 = vmatprep.subr.mxu0 0.0
      %877 = vmatpush1.msra.mxu0 0.0
      %878 = vmatprep.subr.mxu0 0.0
      %879 = vmatpush1.msra.mxu0 0.0
      %880 = vmatprep.subr.mxu0 0.0
      %881 = vmatpush1.msra.mxu0 0.0
      %882 = vmatprep.subr.mxu0 0.0
      %883 = vmatpush1.msra.mxu0 0.0
      %884 = vmatprep.subr.mxu0 0.0
      %885 = vmatpush1.msra.mxu0 0.0
      %886 = vmatprep.subr.mxu0 0.0
      %887 = vmatpush1.msra.mxu0 0.0
      %888 = vmatprep.subr.mxu0 0.0
      %889 = vmatpush1.msra.mxu0 0.0
      %890 = vmatprep.subr.mxu0 0.0
      %891 = vmatpush1.msra.mxu0 0.0
      %892 = vmatprep.subr.mxu0 0.0
      %893 = vmatpush1.msra.mxu0 0.0
      %894 = vmatprep.subr.mxu0 0.0
      %895 = vmatpush1.msra.mxu0 0.0
      %896 = vmatprep.subr.mxu0 0.0
      %897 = vmatpush1.msra.mxu0 0.0
      %898 = vmatprep.subr.mxu0 0.0
      %899 = vmatpush1.msra.mxu0 0.0
      %900 = vmatprep.subr.mxu0 0.0
      %901 = vmatpush1.msra.mxu0 0.0
      %902 = vmatprep.subr.mxu0 0.0
      %903 = vmatpush1.msra.mxu0 0.0
      %904 = vmatprep.subr.mxu0 0.0
      %905 = vmatpush1.msra.mxu0 0.0
      %906 = vmatprep.subr.mxu0 0.0
      %907 = vmatpush1.msra.mxu0 0.0
      %908 = vmatprep.subr.mxu0 0.0
      %909 = vmatpush1.msra.mxu0 0.0
      %910 = vmatprep.subr.mxu0 0.0
      %911 = vmatpush1.msra.mxu0 0.0
      %912 = vmatprep.subr.mxu0 0.0
      %913 = vmatpush1.msra.mxu0 0.0
      %914 = vmatprep.mubr.f32.mxu0 0.0
      %915 = vmatmul.mubr.f32.gmra.mrb[0].mxu0 %v848
      %v916 = vpop.f32.mrb[0].mxu0
      %v917 = vadd.f32 %v745, %v916
      %v918 = vpop.f32.mrb[0].mxu0
      %919 = vdwg.mxu0
      %vm920 = vcmask 31744
      %v922 = vsel %vm920, %v843, 0
      %v925 = vsel %vm920, %v844, 0
      %v928 = vsel %vm920, %v917, 0
      %930 = vmatprep.subr.mxu0 0.0
      %931 = vmatpush1.xpose.msra.mxu0 %v928
      %932 = vmatprep.subr.mxu0 0.0
      %933 = vmatpush1.xpose.msra.mxu0 0.0
      %934 = vmatprep.subr.mxu0 0.0
      %935 = vmatpush1.xpose.msra.mxu0 0.0
      %936 = vmatprep.subr.mxu0 0.0
      %937 = vmatpush1.xpose.msra.mxu0 0.0
      %938 = vmatprep.subr.mxu0 0.0
      %939 = vmatpush1.xpose.msra.mxu0 0.0
      %940 = vmatprep.subr.mxu0 0.0
      %941 = vmatpush1.xpose.msra.mxu0 0.0
      %942 = vmatprep.subr.mxu0 0.0
      %943 = vmatpush1.xpose.msra.mxu0 0.0
      %944 = vmatprep.subr.mxu0 0.0
      %945 = vmatpush1.xpose.msra.mxu0 0.0
      %946 = vmatprep.subr.mxu0 0.0
      %947 = vmatpush1.xpose.msra.mxu0 0.0
      %948 = vmatprep.subr.mxu0 0.0
      %949 = vmatpush1.xpose.msra.mxu0 0.0
      %950 = vmatprep.subr.mxu0 0.0
      %951 = vmatpush1.xpose.msra.mxu0 0.0
      %952 = vmatprep.subr.mxu0 0.0
      %953 = vmatpush1.xpose.msra.mxu0 0.0
      %954 = vmatprep.subr.mxu0 0.0
      %955 = vmatpush1.xpose.msra.mxu0 0.0
      %956 = vmatprep.subr.mxu0 0.0
      %957 = vmatpush1.xpose.msra.mxu0 0.0
      %958 = vmatprep.subr.mxu0 0.0
      %959 = vmatpush1.xpose.msra.mxu0 0.0
      %960 = vmatprep.subr.mxu0 0.0
      %961 = vmatpush1.xpose.msra.mxu0 0.0
      %962 = vmatprep.subr.mxu0 0.0
      %963 = vmatpush1.xpose.msra.mxu0 0.0
      %964 = vmatprep.subr.mxu0 0.0
      %965 = vmatpush1.xpose.msra.mxu0 0.0
      %966 = vmatprep.subr.mxu0 0.0
      %967 = vmatpush1.xpose.msra.mxu0 0.0
      %968 = vmatprep.subr.mxu0 0.0
      %969 = vmatpush1.xpose.msra.mxu0 0.0
      %970 = vmatprep.subr.mxu0 0.0
      %971 = vmatpush1.xpose.msra.mxu0 0.0
      %972 = vmatprep.subr.mxu0 0.0
      %973 = vmatpush1.xpose.msra.mxu0 0.0
      %974 = vmatprep.subr.mxu0 0.0
      %975 = vmatpush1.xpose.msra.mxu0 0.0
      %976 = vmatprep.subr.mxu0 0.0
      %977 = vmatpush1.xpose.msra.mxu0 0.0
      %978 = vmatprep.subr.mxu0 0.0
      %979 = vmatpush1.xpose.msra.mxu0 0.0
      %980 = vmatprep.subr.mxu0 0.0
      %981 = vmatpush1.xpose.msra.mxu0 0.0
      %982 = vmatprep.subr.mxu0 0.0
      %983 = vmatpush1.xpose.msra.mxu0 0.0
      %984 = vmatprep.subr.mxu0 0.0
      %985 = vmatpush1.xpose.msra.mxu0 0.0
      %986 = vmatprep.subr.mxu0 0.0
      %987 = vmatpush1.xpose.msra.mxu0 0.0
      %988 = vmatprep.subr.mxu0 0.0
      %989 = vmatpush1.xpose.msra.mxu0 0.0
      %990 = vmatprep.subr.mxu0 0.0
      %991 = vmatpush1.xpose.msra.mxu0 0.0
      %992 = vmatprep.subr.mxu0 0.0
      %993 = vmatpush1.xpose.msra.mxu0 0.0
      %994 = vmatprep.mubr.f32.mxu0 0.0
      %995 = vmatmul.mubr.f32.gmra.mrb[0].mxu0 %v922
      %v996 = vpop.f32.mrb[0].mxu0
      %v997 = vadd.f32 0.0, %v996
      %v998 = vpop.f32.mrb[0].mxu0
      %999 = vmatprep.mubr.f32.mxu0 0.0
      %1000 = vmatmul.mubr.f32.gmra.mrb[0].mxu0 %v925
      %v1001 = vpop.f32.mrb[0].mxu0
      %v1002 = vadd.f32 0.0, %v1001
      %v1003 = vpop.f32.mrb[0].mxu0
      %1004 = vdwg.mxu0
      %v1005 = vsel %vm920, %v997, -inf
      %v1006 = vsel %vm920, %v1002, -inf
      %v1007 = vmax.f32 %v1005, %v1006
      %v1008 = vrot.slane %v1007, 4
      %v1009 = vmax.f32 %v1007, %v1008
      %v1010 = vrot.slane %v1009, 2
      %v1011 = vmax.f32 %v1009, %v1010
      %v1012 = vrot.slane %v1011, 1
      %v1013 = vmax.f32 %v1011, %v1012
      %v1014 = vsub.f32 %v997, %v1013
      %v1015 = vsub.f32 %v1002, %v1013
      %v1016 = vmul.f32 %v1014, 1.442695
      %v1017 = vpow.pop %v1016
      %v1018 = vmul.f32 %v1015, 1.442695
      %v1019 = vpow.pop %v1018
      %v1020 = vsel %vm920, %v1017, 0.0
      %v1021 = vsel %vm920, %v1019, 0.0
      %v1022 = vadd.f32 %v1020, %v1021
      %v1023 = vrot.slane %v1022, 4
      %v1024 = vadd.f32 %v1022, %v1023
      %v1025 = vrot.slane %v1024, 2
      %v1026 = vadd.f32 %v1024, %v1025
      %v1027 = vrot.slane %v1026, 1
      %v1028 = vadd.f32 %v1026, %v1027
      %v1029 = vrcp.pop %v1028
      %v1030 = vmul.f32 %v1017, %v1029
      %v1031 = vmul.f32 %v1019, %v1029
      %v1033 = vsel %vm920, %v1030, 0
      %v1036 = vsel %vm920, %v1031, 0
      %vm1038 = vcmask 1043456
      %v1039 = vsel %vm1038, %v917, 0
      %1041 = vmatprep.subr.mxu0 0.0
      %1042 = vmatpush1.msra.mxu0 %v1039
      %1043 = vmatprep.subr.mxu0 0.0
      %1044 = vmatpush1.msra.mxu0 0.0
      %1045 = vmatprep.subr.mxu0 0.0
      %1046 = vmatpush1.msra.mxu0 0.0
      %1047 = vmatprep.subr.mxu0 0.0
      %1048 = vmatpush1.msra.mxu0 0.0
      %1049 = vmatprep.subr.mxu0 0.0
      %1050 = vmatpush1.msra.mxu0 0.0
      %1051 = vmatprep.subr.mxu0 0.0
      %1052 = vmatpush1.msra.mxu0 0.0
      %1053 = vmatprep.subr.mxu0 0.0
      %1054 = vmatpush1.msra.mxu0 0.0
      %1055 = vmatprep.subr.mxu0 0.0
      %1056 = vmatpush1.msra.mxu0 0.0
      %1057 = vmatprep.subr.mxu0 0.0
      %1058 = vmatpush1.msra.mxu0 0.0
      %1059 = vmatprep.subr.mxu0 0.0
      %1060 = vmatpush1.msra.mxu0 0.0
      %1061 = vmatprep.subr.mxu0 0.0
      %1062 = vmatpush1.msra.mxu0 0.0
      %1063 = vmatprep.subr.mxu0 0.0
      %1064 = vmatpush1.msra.mxu0 0.0
      %1065 = vmatprep.subr.mxu0 0.0
      %1066 = vmatpush1.msra.mxu0 0.0
      %1067 = vmatprep.subr.mxu0 0.0
      %1068 = vmatpush1.msra.mxu0 0.0
      %1069 = vmatprep.subr.mxu0 0.0
      %1070 = vmatpush1.msra.mxu0 0.0
      %1071 = vmatprep.subr.mxu0 0.0
      %1072 = vmatpush1.msra.mxu0 0.0
      %1073 = vmatprep.subr.mxu0 0.0
      %1074 = vmatpush1.msra.mxu0 0.0
      %1075 = vmatprep.subr.mxu0 0.0
      %1076 = vmatpush1.msra.mxu0 0.0
      %1077 = vmatprep.subr.mxu0 0.0
      %1078 = vmatpush1.msra.mxu0 0.0
      %1079 = vmatprep.subr.mxu0 0.0
      %1080 = vmatpush1.msra.mxu0 0.0
      %1081 = vmatprep.subr.mxu0 0.0
      %1082 = vmatpush1.msra.mxu0 0.0
      %1083 = vmatprep.subr.mxu0 0.0
      %1084 = vmatpush1.msra.mxu0 0.0
      %1085 = vmatprep.subr.mxu0 0.0
      %1086 = vmatpush1.msra.mxu0 0.0
      %1087 = vmatprep.subr.mxu0 0.0
      %1088 = vmatpush1.msra.mxu0 0.0
      %1089 = vmatprep.subr.mxu0 0.0
      %1090 = vmatpush1.msra.mxu0 0.0
      %1091 = vmatprep.subr.mxu0 0.0
      %1092 = vmatpush1.msra.mxu0 0.0
      %1093 = vmatprep.subr.mxu0 0.0
      %1094 = vmatpush1.msra.mxu0 0.0
      %1095 = vmatprep.subr.mxu0 0.0
      %1096 = vmatpush1.msra.mxu0 0.0
      %1097 = vmatprep.subr.mxu0 0.0
      %1098 = vmatpush1.msra.mxu0 0.0
      %1099 = vmatprep.subr.mxu0 0.0
      %1100 = vmatpush1.msra.mxu0 0.0
      %1101 = vmatprep.subr.mxu0 0.0
      %1102 = vmatpush1.msra.mxu0 0.0
      %1103 = vmatprep.subr.mxu0 0.0
      %1104 = vmatpush1.msra.mxu0 0.0
      %1105 = vmatprep.mubr.f32.mxu0 0.0
      %1106 = vmatmul.mubr.f32.gmra.mrb[0].mxu0 %v1033
      %v1107 = vpop.f32.mrb[0].mxu0
      %v1108 = vadd.f32 0.0, %v1107
      %v1109 = vpop.f32.mrb[0].mxu0
      %1110 = vmatprep.mubr.f32.mxu0 0.0
      %1111 = vmatmul.mubr.f32.gmra.mrb[0].mxu0 %v1036
      %v1112 = vpop.f32.mrb[0].mxu0
      %v1113 = vadd.f32 0.0, %v1112
      %v1114 = vpop.f32.mrb[0].mxu0
      %1115 = vdwg.mxu0
      %v1116 = vrot.slane %v917, 4
      %v1118 = vsel %vm920, %v845, 0
      %v1121 = vsel %vm920, %v846, 0
      %v1123 = vsel %vm920, %v1116, 0
      %1125 = vmatprep.subr.mxu0 0.0
      %1126 = vmatpush1.xpose.msra.mxu0 %v1123
      %1127 = vmatprep.subr.mxu0 0.0
      %1128 = vmatpush1.xpose.msra.mxu0 0.0
      %1129 = vmatprep.subr.mxu0 0.0
      %1130 = vmatpush1.xpose.msra.mxu0 0.0
      %1131 = vmatprep.subr.mxu0 0.0
      %1132 = vmatpush1.xpose.msra.mxu0 0.0
      %1133 = vmatprep.subr.mxu0 0.0
      %1134 = vmatpush1.xpose.msra.mxu0 0.0
      %1135 = vmatprep.subr.mxu0 0.0
      %1136 = vmatpush1.xpose.msra.mxu0 0.0
      %1137 = vmatprep.subr.mxu0 0.0
      %1138 = vmatpush1.xpose.msra.mxu0 0.0
      %1139 = vmatprep.subr.mxu0 0.0
      %1140 = vmatpush1.xpose.msra.mxu0 0.0
      %1141 = vmatprep.subr.mxu0 0.0
      %1142 = vmatpush1.xpose.msra.mxu0 0.0
      %1143 = vmatprep.subr.mxu0 0.0
      %1144 = vmatpush1.xpose.msra.mxu0 0.0
      %1145 = vmatprep.subr.mxu0 0.0
      %1146 = vmatpush1.xpose.msra.mxu0 0.0
      %1147 = vmatprep.subr.mxu0 0.0
      %1148 = vmatpush1.xpose.msra.mxu0 0.0
      %1149 = vmatprep.subr.mxu0 0.0
      %1150 = vmatpush1.xpose.msra.mxu0 0.0
      %1151 = vmatprep.subr.mxu0 0.0
      %1152 = vmatpush1.xpose.msra.mxu0 0.0
      %1153 = vmatprep.subr.mxu0 0.0
      %1154 = vmatpush1.xpose.msra.mxu0 0.0
      %1155 = vmatprep.subr.mxu0 0.0
      %1156 = vmatpush1.xpose.msra.mxu0 0.0
      %1157 = vmatprep.subr.mxu0 0.0
      %1158 = vmatpush1.xpose.msra.mxu0 0.0
      %1159 = vmatprep.subr.mxu0 0.0
      %1160 = vmatpush1.xpose.msra.mxu0 0.0
      %1161 = vmatprep.subr.mxu0 0.0
      %1162 = vmatpush1.xpose.msra.mxu0 0.0
      %1163 = vmatprep.subr.mxu0 0.0
      %1164 = vmatpush1.xpose.msra.mxu0 0.0
      %1165 = vmatprep.subr.mxu0 0.0
      %1166 = vmatpush1.xpose.msra.mxu0 0.0
      %1167 = vmatprep.subr.mxu0 0.0
      %1168 = vmatpush1.xpose.msra.mxu0 0.0
      %1169 = vmatprep.subr.mxu0 0.0
      %1170 = vmatpush1.xpose.msra.mxu0 0.0
      %1171 = vmatprep.subr.mxu0 0.0
      %1172 = vmatpush1.xpose.msra.mxu0 0.0
      %1173 = vmatprep.subr.mxu0 0.0
      %1174 = vmatpush1.xpose.msra.mxu0 0.0
      %1175 = vmatprep.subr.mxu0 0.0
      %1176 = vmatpush1.xpose.msra.mxu0 0.0
      %1177 = vmatprep.subr.mxu0 0.0
      %1178 = vmatpush1.xpose.msra.mxu0 0.0
      %1179 = vmatprep.subr.mxu0 0.0
      %1180 = vmatpush1.xpose.msra.mxu0 0.0
      %1181 = vmatprep.subr.mxu0 0.0
      %1182 = vmatpush1.xpose.msra.mxu0 0.0
      %1183 = vmatprep.subr.mxu0 0.0
      %1184 = vmatpush1.xpose.msra.mxu0 0.0
      %1185 = vmatprep.subr.mxu0 0.0
      %1186 = vmatpush1.xpose.msra.mxu0 0.0
      %1187 = vmatprep.subr.mxu0 0.0
      %1188 = vmatpush1.xpose.msra.mxu0 0.0
      %1189 = vmatprep.mubr.f32.mxu0 0.0
      %1190 = vmatmul.mubr.f32.gmra.mrb[0].mxu0 %v1118
      %v1191 = vpop.f32.mrb[0].mxu0
      %v1192 = vadd.f32 0.0, %v1191
      %v1193 = vpop.f32.mrb[0].mxu0
      %1194 = vmatprep.mubr.f32.mxu0 0.0
      %1195 = vmatmul.mubr.f32.gmra.mrb[0].mxu0 %v1121
      %v1196 = vpop.f32.mrb[0].mxu0
      %v1197 = vadd.f32 0.0, %v1196
      %v1198 = vpop.f32.mrb[0].mxu0
      %1199 = vdwg.mxu0
      %v1200 = vsel %vm920, %v1192, -inf
      %v1201 = vsel %vm920, %v1197, -inf
      %v1202 = vmax.f32 %v1200, %v1201
      %v1203 = vrot.slane %v1202, 4
      %v1204 = vmax.f32 %v1202, %v1203
      %v1205 = vrot.slane %v1204, 2
      %v1206 = vmax.f32 %v1204, %v1205
      %v1207 = vrot.slane %v1206, 1
      %v1208 = vmax.f32 %v1206, %v1207
      %v1209 = vsub.f32 %v1192, %v1208
      %v1210 = vsub.f32 %v1197, %v1208
      %v1211 = vmul.f32 %v1209, 1.442695
      %v1212 = vpow.pop %v1211
      %v1213 = vmul.f32 %v1210, 1.442695
      %v1214 = vpow.pop %v1213
      %v1215 = vsel %vm920, %v1212, 0.0
      %v1216 = vsel %vm920, %v1214, 0.0
      %v1217 = vadd.f32 %v1215, %v1216
      %v1218 = vrot.slane %v1217, 4
      %v1219 = vadd.f32 %v1217, %v1218
      %v1220 = vrot.slane %v1219, 2
      %v1221 = vadd.f32 %v1219, %v1220
      %v1222 = vrot.slane %v1221, 1
      %v1223 = vadd.f32 %v1221, %v1222
      %v1224 = vrcp.pop %v1223
      %v1225 = vmul.f32 %v1212, %v1224
      %v1226 = vmul.f32 %v1214, %v1224
      %v1228 = vsel %vm920, %v1225, 0
      %v1231 = vsel %vm920, %v1226, 0
      %v1233 = vsel %vm1038, %v1116, 0
      %1235 = vmatprep.subr.mxu0 0.0
      %1236 = vmatpush1.msra.mxu0 %v1233
      %1237 = vmatprep.subr.mxu0 0.0
      %1238 = vmatpush1.msra.mxu0 0.0
      %1239 = vmatprep.subr.mxu0 0.0
      %1240 = vmatpush1.msra.mxu0 0.0
      %1241 = vmatprep.subr.mxu0 0.0
      %1242 = vmatpush1.msra.mxu0 0.0
      %1243 = vmatprep.subr.mxu0 0.0
      %1244 = vmatpush1.msra.mxu0 0.0
      %1245 = vmatprep.subr.mxu0 0.0
      %1246 = vmatpush1.msra.mxu0 0.0
      %1247 = vmatprep.subr.mxu0 0.0
      %1248 = vmatpush1.msra.mxu0 0.0
      %1249 = vmatprep.subr.mxu0 0.0
      %1250 = vmatpush1.msra.mxu0 0.0
      %1251 = vmatprep.subr.mxu0 0.0
      %1252 = vmatpush1.msra.mxu0 0.0
      %1253 = vmatprep.subr.mxu0 0.0
      %1254 = vmatpush1.msra.mxu0 0.0
      %1255 = vmatprep.subr.mxu0 0.0
      %1256 = vmatpush1.msra.mxu0 0.0
      %1257 = vmatprep.subr.mxu0 0.0
      %1258 = vmatpush1.msra.mxu0 0.0
      %1259 = vmatprep.subr.mxu0 0.0
      %1260 = vmatpush1.msra.mxu0 0.0
      %1261 = vmatprep.subr.mxu0 0.0
      %1262 = vmatpush1.msra.mxu0 0.0
      %1263 = vmatprep.subr.mxu0 0.0
      %1264 = vmatpush1.msra.mxu0 0.0
      %1265 = vmatprep.subr.mxu0 0.0
      %1266 = vmatpush1.msra.mxu0 0.0
      %1267 = vmatprep.subr.mxu0 0.0
      %1268 = vmatpush1.msra.mxu0 0.0
      %1269 = vmatprep.subr.mxu0 0.0
      %1270 = vmatpush1.msra.mxu0 0.0
      %1271 = vmatprep.subr.mxu0 0.0
      %1272 = vmatpush1.msra.mxu0 0.0
      %1273 = vmatprep.subr.mxu0 0.0
      %1274 = vmatpush1.msra.mxu0 0.0
      %1275 = vmatprep.subr.mxu0 0.0
      %1276 = vmatpush1.msra.mxu0 0.0
      %1277 = vmatprep.subr.mxu0 0.0
      %1278 = vmatpush1.msra.mxu0 0.0
      %1279 = vmatprep.subr.mxu0 0.0
      %1280 = vmatpush1.msra.mxu0 0.0
      %1281 = vmatprep.subr.mxu0 0.0
      %1282 = vmatpush1.msra.mxu0 0.0
      %1283 = vmatprep.subr.mxu0 0.0
      %1284 = vmatpush1.msra.mxu0 0.0
      %1285 = vmatprep.subr.mxu0 0.0
      %1286 = vmatpush1.msra.mxu0 0.0
      %1287 = vmatprep.subr.mxu0 0.0
      %1288 = vmatpush1.msra.mxu0 0.0
      %1289 = vmatprep.subr.mxu0 0.0
      %1290 = vmatpush1.msra.mxu0 0.0
      %1291 = vmatprep.subr.mxu0 0.0
      %1292 = vmatpush1.msra.mxu0 0.0
      %1293 = vmatprep.subr.mxu0 0.0
      %1294 = vmatpush1.msra.mxu0 0.0
      %1295 = vmatprep.subr.mxu0 0.0
      %1296 = vmatpush1.msra.mxu0 0.0
      %1297 = vmatprep.subr.mxu0 0.0
      %1298 = vmatpush1.msra.mxu0 0.0
      %1299 = vmatprep.mubr.f32.mxu0 0.0
      %1300 = vmatmul.mubr.f32.gmra.mrb[0].mxu0 %v1228
      %v1301 = vpop.f32.mrb[0].mxu0
      %v1302 = vadd.f32 0.0, %v1301
      %v1303 = vpop.f32.mrb[0].mxu0
      %1304 = vmatprep.mubr.f32.mxu0 0.0
      %1305 = vmatmul.mubr.f32.gmra.mrb[0].mxu0 %v1231
      %v1306 = vpop.f32.mrb[0].mxu0
      %v1307 = vadd.f32 0.0, %v1306
      %v1308 = vpop.f32.mrb[0].mxu0
      %1309 = vdwg.mxu0
      %v1310 = vlaneseq
      %v1311 = vshrl.u32 %v1310, 7
      %v1312 = vsub.s32 0, %v1311
      %v1313 = vrot.slane %v223, %v1312
      %v1315 = vsel %vm920, %v1108, 0
      %v1318 = vsel %vm920, %v1113, 0
      %v1321 = vsel %vm920, %v1302, 0
      %v1324 = vsel %vm920, %v1307, 0
      %v1327 = vsel %vm1038, %v230, 0
      %1329 = vmatprep.subr.mxu0 0.0
      %1330 = vmatpush1.msra.mxu0 %v1327
      %1331 = vmatprep.subr.mxu0 0.0
      %1332 = vmatpush1.msra.mxu0 0.0
      %1333 = vmatprep.subr.mxu0 0.0
      %1334 = vmatpush1.msra.mxu0 0.0
      %1335 = vmatprep.subr.mxu0 0.0
      %1336 = vmatpush1.msra.mxu0 0.0
      %1337 = vmatprep.subr.mxu0 0.0
      %1338 = vmatpush1.msra.mxu0 0.0
      %1339 = vmatprep.subr.mxu0 0.0
      %1340 = vmatpush1.msra.mxu0 0.0
      %1341 = vmatprep.subr.mxu0 0.0
      %1342 = vmatpush1.msra.mxu0 0.0
      %1343 = vmatprep.subr.mxu0 0.0
      %1344 = vmatpush1.msra.mxu0 0.0
      %1345 = vmatprep.subr.mxu0 0.0
      %1346 = vmatpush1.msra.mxu0 0.0
      %1347 = vmatprep.subr.mxu0 0.0
      %1348 = vmatpush1.msra.mxu0 0.0
      %1349 = vmatprep.subr.mxu0 0.0
      %1350 = vmatpush1.msra.mxu0 0.0
      %1351 = vmatprep.subr.mxu0 0.0
      %1352 = vmatpush1.msra.mxu0 0.0
      %1353 = vmatprep.subr.mxu0 0.0
      %1354 = vmatpush1.msra.mxu0 0.0
      %1355 = vmatprep.subr.mxu0 0.0
      %1356 = vmatpush1.msra.mxu0 0.0
      %1357 = vmatprep.subr.mxu0 0.0
      %1358 = vmatpush1.msra.mxu0 0.0
      %1359 = vmatprep.subr.mxu0 0.0
      %1360 = vmatpush1.msra.mxu0 0.0
      %1361 = vmatprep.subr.mxu0 0.0
      %1362 = vmatpush1.msra.mxu0 0.0
      %1363 = vmatprep.subr.mxu0 0.0
      %1364 = vmatpush1.msra.mxu0 0.0
      %1365 = vmatprep.subr.mxu0 0.0
      %1366 = vmatpush1.msra.mxu0 0.0
      %1367 = vmatprep.subr.mxu0 0.0
      %1368 = vmatpush1.msra.mxu0 0.0
      %1369 = vmatprep.subr.mxu0 0.0
      %1370 = vmatpush1.msra.mxu0 0.0
      %1371 = vmatprep.subr.mxu0 0.0
      %1372 = vmatpush1.msra.mxu0 0.0
      %1373 = vmatprep.subr.mxu0 0.0
      %1374 = vmatpush1.msra.mxu0 0.0
      %1375 = vmatprep.subr.mxu0 0.0
      %1376 = vmatpush1.msra.mxu0 0.0
      %1377 = vmatprep.subr.mxu0 0.0
      %1378 = vmatpush1.msra.mxu0 0.0
      %1379 = vmatprep.subr.mxu0 0.0
      %1380 = vmatpush1.msra.mxu0 0.0
      %1381 = vmatprep.subr.mxu0 0.0
      %1382 = vmatpush1.msra.mxu0 0.0
      %1383 = vmatprep.subr.mxu0 0.0
      %1384 = vmatpush1.msra.mxu0 0.0
      %1385 = vmatprep.subr.mxu0 0.0
      %1386 = vmatpush1.msra.mxu0 0.0
      %1387 = vmatprep.subr.mxu0 0.0
      %1388 = vmatpush1.msra.mxu0 0.0
      %1389 = vmatprep.subr.mxu0 0.0
      %1390 = vmatpush1.msra.mxu0 0.0
      %1391 = vmatprep.subr.mxu0 0.0
      %1392 = vmatpush1.msra.mxu0 0.0
      %1393 = vmatprep.mubr.f32.mxu0 0.0
      %1394 = vmatmul.mubr.f32.gmra.mrb[0].mxu0 %v1315
      %v1395 = vpop.f32.mrb[0].mxu0
      %v1396 = vadd.f32 %v1313, %v1395
      %v1397 = vpop.f32.mrb[0].mxu0
      %1398 = vmatprep.mubr.f32.mxu0 0.0
      %1399 = vmatmul.mubr.f32.gmra.mrb[0].mxu0 %v1318
      %v1400 = vpop.f32.mrb[0].mxu0
      %v1401 = vadd.f32 %v1313, %v1400
      %v1402 = vpop.f32.mrb[0].mxu0
      %1403 = vmatprep.mubr.f32.mxu0 0.0
      %1404 = vmatmul.mubr.f32.gmra.mrb[0].mxu0 %v1321
      %v1405 = vpop.f32.mrb[0].mxu0
      %v1406 = vadd.f32 %v1313, %v1405
      %v1407 = vpop.f32.mrb[0].mxu0
      %1408 = vmatprep.mubr.f32.mxu0 0.0
      %1409 = vmatmul.mubr.f32.gmra.mrb[0].mxu0 %v1324
      %v1410 = vpop.f32.mrb[0].mxu0
      %v1411 = vadd.f32 %v1313, %v1410
      %v1412 = vpop.f32.mrb[0].mxu0
      %1413 = vdwg.mxu0
      %v1414 = vadd.f32 %v233, %v1396
      %v1415 = vadd.f32 %v234, %v1401
      %v1416 = vadd.f32 %v235, %v1406
      %v1417 = vadd.f32 %v236, %v1411
      %v1418 = vsel %vm237, %v1414, 0.0
      %1419 = vadd.xlane.f32.xlu0 %v1418
      %v1420 = vpop.xlane.xlu0 %1419
      %v1421 = vsel %vm237, %v1415, 0.0
      %1422 = vadd.xlane.f32.xlu0 %v1421
      %v1423 = vpop.xlane.xlu0 %1422
      %v1424 = vsel %vm237, %v1416, 0.0
      %1425 = vadd.xlane.f32.xlu0 %v1424
      %v1426 = vpop.xlane.xlu0 %1425
      %v1427 = vsel %vm237, %v1417, 0.0
      %1428 = vadd.xlane.f32.xlu0 %v1427
      %v1429 = vpop.xlane.xlu0 %1428
      %v1430 = vmul.f32 %v1420, %v250
      %v1431 = vmul.f32 %v1423, %v250
      %v1432 = vmul.f32 %v1426, %v250
      %v1433 = vmul.f32 %v1429, %v250
      %v1434 = vsub.f32 %v1414, %v1430
      %v1435 = vsub.f32 %v1415, %v1431
      %v1436 = vsub.f32 %v1416, %v1432
      %v1437 = vsub.f32 %v1417, %v1433
      %v1438 = vmul.f32 %v1434, %v1434
      %v1439 = vmul.f32 %v1435, %v1435
      %v1440 = vmul.f32 %v1436, %v1436
      %v1441 = vmul.f32 %v1437, %v1437
      %v1442 = vsel %vm237, %v1438, 0.0
      %1443 = vadd.xlane.f32.xlu0 %v1442
      %v1444 = vpop.xlane.xlu0 %1443
      %v1445 = vsel %vm237, %v1439, 0.0
      %1446 = vadd.xlane.f32.xlu0 %v1445
      %v1447 = vpop.xlane.xlu0 %1446
      %v1448 = vsel %vm237, %v1440, 0.0
      %1449 = vadd.xlane.f32.xlu0 %v1448
      %v1450 = vpop.xlane.xlu0 %1449
      %v1451 = vsel %vm237, %v1441, 0.0
      %1452 = vadd.xlane.f32.xlu0 %v1451
      %v1453 = vpop.xlane.xlu0 %1452
      %v1454 = vmul.f32 %v1444, %v250
      %v1455 = vmul.f32 %v1447, %v250
      %v1456 = vmul.f32 %v1450, %v250
      %v1457 = vmul.f32 %v1453, %v250
      %v1458 = vadd.f32 %v1454, 1e-05
      %v1459 = vadd.f32 %v1455, 1e-05
      %v1460 = vadd.f32 %v1456, 1e-05
      %v1461 = vadd.f32 %v1457, 1e-05
      %v1462 = vrsqrt.pop %v1458
      %v1463 = vrsqrt.pop %v1459
      %v1464 = vrsqrt.pop %v1460
      %v1465 = vrsqrt.pop %v1461
      %v1466 = vmul.f32 %v1434, %v1462
      %v1467 = vmul.f32 %v1435, %v1463
      %v1468 = vmul.f32 %v1436, %v1464
      %v1469 = vmul.f32 %v1437, %v1465
      %v1470 = vlaneseq
      %v1471 = vshrl.u32 %v1470, 7
      %v1472 = vsub.s32 0, %v1471
      %v1473 = vrot.slane %v224, %v1472
      %v1474 = vmul.f32 %v1466, %v1473
      %v1475 = vmul.f32 %v1467, %v1473
      %v1476 = vmul.f32 %v1468, %v1473
      %v1477 = vmul.f32 %v1469, %v1473
      %v1478 = vlaneseq
      %v1479 = vshrl.u32 %v1478, 7
      %v1480 = vsub.s32 0, %v1479
      %v1481 = vrot.slane %v225, %v1480
      %v1482 = vadd.f32 %v1474, %v1481
      %v1483 = vadd.f32 %v1475, %v1481
      %v1484 = vadd.f32 %v1476, %v1481
      %v1485 = vadd.f32 %v1477, %v1481
      %v1486 = vlaneseq
      %v1487 = vshrl.u32 %v1486, 7
      %v1488 = vsub.s32 0, %v1487
      %v1489 = vrot.slane %v228, %v1488
      %v1491 = vsel %vm237, %v1482, 0
      %v1494 = vsel %vm237, %v1483, 0
      %v1497 = vsel %vm237, %v1484, 0
      %v1500 = vsel %vm237, %v1485, 0
      %1502 = vmatprep.subr.mxu0 0.0
      %1503 = vmatpush1.msra.mxu0 %v231
      %1504 = vmatprep.subr.mxu0 0.0
      %1505 = vmatpush1.msra.mxu0 0.0
      %1506 = vmatprep.subr.mxu0 0.0
      %1507 = vmatpush1.msra.mxu0 0.0
      %1508 = vmatprep.subr.mxu0 0.0
      %1509 = vmatpush1.msra.mxu0 0.0
      %1510 = vmatprep.subr.mxu0 0.0
      %1511 = vmatpush1.msra.mxu0 0.0
      %1512 = vmatprep.subr.mxu0 0.0
      %1513 = vmatpush1.msra.mxu0 0.0
      %1514 = vmatprep.subr.mxu0 0.0
      %1515 = vmatpush1.msra.mxu0 0.0
      %1516 = vmatprep.subr.mxu0 0.0
      %1517 = vmatpush1.msra.mxu0 0.0
      %1518 = vmatprep.subr.mxu0 0.0
      %1519 = vmatpush1.msra.mxu0 0.0
      %1520 = vmatprep.subr.mxu0 0.0
      %1521 = vmatpush1.msra.mxu0 0.0
      %1522 = vmatprep.subr.mxu0 0.0
      %1523 = vmatpush1.msra.mxu0 0.0
      %1524 = vmatprep.subr.mxu0 0.0
      %1525 = vmatpush1.msra.mxu0 0.0
      %1526 = vmatprep.subr.mxu0 0.0
      %1527 = vmatpush1.msra.mxu0 0.0
      %1528 = vmatprep.subr.mxu0 0.0
      %1529 = vmatpush1.msra.mxu0 0.0
      %1530 = vmatprep.subr.mxu0 0.0
      %1531 = vmatpush1.msra.mxu0 0.0
      %1532 = vmatprep.subr.mxu0 0.0
      %1533 = vmatpush1.msra.mxu0 0.0
      %1534 = vmatprep.subr.mxu0 0.0
      %1535 = vmatpush1.msra.mxu0 0.0
      %1536 = vmatprep.subr.mxu0 0.0
      %1537 = vmatpush1.msra.mxu0 0.0
      %1538 = vmatprep.subr.mxu0 0.0
      %1539 = vmatpush1.msra.mxu0 0.0
      %1540 = vmatprep.subr.mxu0 0.0
      %1541 = vmatpush1.msra.mxu0 0.0
      %1542 = vmatprep.subr.mxu0 0.0
      %1543 = vmatpush1.msra.mxu0 0.0
      %1544 = vmatprep.subr.mxu0 0.0
      %1545 = vmatpush1.msra.mxu0 0.0
      %1546 = vmatprep.subr.mxu0 0.0
      %1547 = vmatpush1.msra.mxu0 0.0
      %1548 = vmatprep.subr.mxu0 0.0
      %1549 = vmatpush1.msra.mxu0 0.0
      %1550 = vmatprep.subr.mxu0 0.0
      %1551 = vmatpush1.msra.mxu0 0.0
      %1552 = vmatprep.subr.mxu0 0.0
      %1553 = vmatpush1.msra.mxu0 0.0
      %1554 = vmatprep.subr.mxu0 0.0
      %1555 = vmatpush1.msra.mxu0 0.0
      %1556 = vmatprep.subr.mxu0 0.0
      %1557 = vmatpush1.msra.mxu0 0.0
      %1558 = vmatprep.subr.mxu0 0.0
      %1559 = vmatpush1.msra.mxu0 0.0
      %1560 = vmatprep.subr.mxu0 0.0
      %1561 = vmatpush1.msra.mxu0 0.0
      %1562 = vmatprep.subr.mxu0 0.0
      %1563 = vmatpush1.msra.mxu0 0.0
      %1564 = vmatprep.subr.mxu0 0.0
      %1565 = vmatpush1.msra.mxu0 0.0
      %1566 = vmatprep.mubr.f32.mxu0 0.0
      %1567 = vmatmul.mubr.f32.gmra.mrb[0].mxu0 %v1491
      %v1568 = vpop.f32.mrb[0].mxu0
      %v1569 = vadd.f32 %v1489, %v1568
      %v1570 = vpop.f32.mrb[0].mxu0
      %1571 = vmatprep.mubr.f32.mxu0 0.0
      %1572 = vmatmul.mubr.f32.gmra.mrb[0].mxu0 %v1494
      %v1573 = vpop.f32.mrb[0].mxu0
      %v1574 = vadd.f32 %v1489, %v1573
      %v1575 = vpop.f32.mrb[0].mxu0
      %1576 = vmatprep.mubr.f32.mxu0 0.0
      %1577 = vmatmul.mubr.f32.gmra.mrb[0].mxu0 %v1497
      %v1578 = vpop.f32.mrb[0].mxu0
      %v1579 = vadd.f32 %v1489, %v1578
      %v1580 = vpop.f32.mrb[0].mxu0
      %1581 = vmatprep.mubr.f32.mxu0 0.0
      %1582 = vmatmul.mubr.f32.gmra.mrb[0].mxu0 %v1500
      %v1583 = vpop.f32.mrb[0].mxu0
      %v1584 = vadd.f32 %v1489, %v1583
      %v1585 = vpop.f32.mrb[0].mxu0
      %1586 = vdwg.mxu0
      %v1587 = vmax.f32 %v1569, 0.0
      %v1588 = vmax.f32 %v1574, 0.0
      %v1589 = vmax.f32 %v1579, 0.0
      %v1590 = vmax.f32 %v1584, 0.0
      %v1591 = vlaneseq
      %v1592 = vshrl.u32 %v1591, 7
      %v1593 = vsub.s32 0, %v1592
      %v1594 = vrot.slane %v226, %v1593
      %v1596 = vsel %vm920, %v1587, 0
      %v1599 = vsel %vm920, %v1588, 0
      %v1602 = vsel %vm920, %v1589, 0
      %v1605 = vsel %vm920, %v1590, 0
      %v1608 = vsel %vm1038, %v232, 0
      %1610 = vmatprep.subr.mxu0 0.0
      %1611 = vmatpush1.msra.mxu0 %v1608
      %1612 = vmatprep.subr.mxu0 0.0
      %1613 = vmatpush1.msra.mxu0 0.0
      %1614 = vmatprep.subr.mxu0 0.0
      %1615 = vmatpush1.msra.mxu0 0.0
      %1616 = vmatprep.subr.mxu0 0.0
      %1617 = vmatpush1.msra.mxu0 0.0
      %1618 = vmatprep.subr.mxu0 0.0
      %1619 = vmatpush1.msra.mxu0 0.0
      %1620 = vmatprep.subr.mxu0 0.0
      %1621 = vmatpush1.msra.mxu0 0.0
      %1622 = vmatprep.subr.mxu0 0.0
      %1623 = vmatpush1.msra.mxu0 0.0
      %1624 = vmatprep.subr.mxu0 0.0
      %1625 = vmatpush1.msra.mxu0 0.0
      %1626 = vmatprep.subr.mxu0 0.0
      %1627 = vmatpush1.msra.mxu0 0.0
      %1628 = vmatprep.subr.mxu0 0.0
      %1629 = vmatpush1.msra.mxu0 0.0
      %1630 = vmatprep.subr.mxu0 0.0
      %1631 = vmatpush1.msra.mxu0 0.0
      %1632 = vmatprep.subr.mxu0 0.0
      %1633 = vmatpush1.msra.mxu0 0.0
      %1634 = vmatprep.subr.mxu0 0.0
      %1635 = vmatpush1.msra.mxu0 0.0
      %1636 = vmatprep.subr.mxu0 0.0
      %1637 = vmatpush1.msra.mxu0 0.0
      %1638 = vmatprep.subr.mxu0 0.0
      %1639 = vmatpush1.msra.mxu0 0.0
      %1640 = vmatprep.subr.mxu0 0.0
      %1641 = vmatpush1.msra.mxu0 0.0
      %1642 = vmatprep.subr.mxu0 0.0
      %1643 = vmatpush1.msra.mxu0 0.0
      %1644 = vmatprep.subr.mxu0 0.0
      %1645 = vmatpush1.msra.mxu0 0.0
      %1646 = vmatprep.subr.mxu0 0.0
      %1647 = vmatpush1.msra.mxu0 0.0
      %1648 = vmatprep.subr.mxu0 0.0
      %1649 = vmatpush1.msra.mxu0 0.0
      %1650 = vmatprep.subr.mxu0 0.0
      %1651 = vmatpush1.msra.mxu0 0.0
      %1652 = vmatprep.subr.mxu0 0.0
      %1653 = vmatpush1.msra.mxu0 0.0
      %1654 = vmatprep.subr.mxu0 0.0
      %1655 = vmatpush1.msra.mxu0 0.0
      %1656 = vmatprep.subr.mxu0 0.0
      %1657 = vmatpush1.msra.mxu0 0.0
      %1658 = vmatprep.subr.mxu0 0.0
      %1659 = vmatpush1.msra.mxu0 0.0
      %1660 = vmatprep.subr.mxu0 0.0
      %1661 = vmatpush1.msra.mxu0 0.0
      %1662 = vmatprep.subr.mxu0 0.0
      %1663 = vmatpush1.msra.mxu0 0.0
      %1664 = vmatprep.subr.mxu0 0.0
      %1665 = vmatpush1.msra.mxu0 0.0
      %1666 = vmatprep.subr.mxu0 0.0
      %1667 = vmatpush1.msra.mxu0 0.0
      %1668 = vmatprep.subr.mxu0 0.0
      %1669 = vmatpush1.msra.mxu0 0.0
      %1670 = vmatprep.subr.mxu0 0.0
      %1671 = vmatpush1.msra.mxu0 0.0
      %1672 = vmatprep.subr.mxu0 0.0
      %1673 = vmatpush1.msra.mxu0 0.0
      %1674 = vmatprep.mubr.f32.mxu0 0.0
      %1675 = vmatmul.mubr.f32.gmra.mrb[0].mxu0 %v1596
      %v1676 = vpop.f32.mrb[0].mxu0
      %v1677 = vadd.f32 %v1594, %v1676
      %v1678 = vpop.f32.mrb[0].mxu0
      %1679 = vmatprep.mubr.f32.mxu0 0.0
      %1680 = vmatmul.mubr.f32.gmra.mrb[0].mxu0 %v1599
      %v1681 = vpop.f32.mrb[0].mxu0
      %v1682 = vadd.f32 %v1594, %v1681
      %v1683 = vpop.f32.mrb[0].mxu0
      %1684 = vmatprep.mubr.f32.mxu0 0.0
      %1685 = vmatmul.mubr.f32.gmra.mrb[0].mxu0 %v1602
      %v1686 = vpop.f32.mrb[0].mxu0
      %v1687 = vadd.f32 %v1594, %v1686
      %v1688 = vpop.f32.mrb[0].mxu0
      %1689 = vmatprep.mubr.f32.mxu0 0.0
      %1690 = vmatmul.mubr.f32.gmra.mrb[0].mxu0 %v1605
      %v1691 = vpop.f32.mrb[0].mxu0
      %v1692 = vadd.f32 %v1594, %v1691
      %v1693 = vpop.f32.mrb[0].mxu0
      %1694 = vdwg.mxu0
      %v1695 = vadd.f32 %v1414, %v1677
      %v1696 = vadd.f32 %v1415, %v1682
      %v1697 = vadd.f32 %v1416, %v1687
      %v1698 = vadd.f32 %v1417, %v1692
      %1699 = vst.msk [vmem:[%s216] sm:$0xff] %vm237, %v1695
      %1700 = vst.msk [vmem:[%s216 + $0x8] sm:$0xff] %vm237, %v1696
      %1701 = vst.msk [vmem:[%s216 + $0x10] sm:$0xff] %vm237, %v1697
      %1702 = vst.msk [vmem:[%s216 + $0x18] sm:$0xff] %vm237, %v1698
      %s1703 = smul.u32 4, %s15
      %p1704 = scmp.lt.s32.totalorder %s1703, 7
      %s1705 = scalar_select %p1704, %s1703, 7
      %s1706 = smul.addr %s1705, 8
      %s1707 = scalar_lea.vmem %s4, %s1706
      // Predicated region
      $region37: #{tpu_custom_call.1} parent=35 // pred_check
        %p1708 = pneg %p127
      $region38: #{tpu_custom_call.1} parent=35 // pred_check_branch
        %1710 = sbr.rel (%p1708) target = $region40
      $region39: #{tpu_custom_call.1} parent=35 // pred_region
        %s1711 = smul.u32 4, %s15
      $region40: #{tpu_custom_call.1} parent=35 // pred_fallthru
        _
    $region36: #{tpu_custom_call.1} parent=5 // pred_fallthru
      _
    %p1712 = scmp.le.s32.totalorder 2, %s10
    // Predicated region
    $region41: #{tpu_custom_call.1} parent=5 // pred_check
      %p1713 = pneg %p1712
    $region42: #{tpu_custom_call.1} parent=5 // pred_check_branch
      %1715 = sbr.rel (%p1713) target = $region44
    $region43: #{tpu_custom_call.1} parent=5 // pred_region
      %s1716 = ssub.s32 %s10, 2
      // Predicated region
      $region45: #{tpu_custom_call.1} parent=43 // pred_check
        %p1717 = pneg %p133
      $region46: #{tpu_custom_call.1} parent=43 // pred_check_branch
        %1719 = sbr.rel (%p1717) target = $region48
      $region47: #{tpu_custom_call.1} parent=43 // pred_region
        %s1720 = smul.u32 4, %s16
        %p1721 = scmp.lt.s32.totalorder %s1720, 7
        %s1722 = scalar_select %p1721, %s1720, 7
        %s1723 = smul.addr %s1722, 8
        %s1724 = scalar_lea.vmem %s4, %s1723
      $region48: #{tpu_custom_call.1} parent=43 // pred_fallthru
        _
    $region44: #{tpu_custom_call.1} parent=5 // pred_fallthru
      _
  $region6: #{tpu_custom_call.1} parent=0 // loop_footer
    %s14 = sadd.s32 1, %s10
  $region7: #{tpu_custom_call.1} parent=0 // loop_footer_branch
    %9 = sbr.rel target = $region3
  $region8: #{tpu_custom_call.1} parent=0 // loop_exit
    _

</llo_original>
